<compile_context>
chip_gen: v7x
topology: tpu7x:2x2x1
jax: 0.10.0
libtpu: 0.0.40
codegen_flags: <defaults>
</compile_context>

<pallas_src>
import functools
import math

import jax
import jax.numpy as jnp
from jax.experimental import pallas as pl
from jax.experimental.pallas import tpu as pltpu

_MAX_PACKED_L = 512   # packed super-row length cap for the grouped path


@functools.lru_cache(maxsize=None)
def _device_tuning():
    kind = ""
    try:
        kind = jax.devices()[0].device_kind.lower()
    except Exception:
        pass
    if "v7" in kind:
        # 64 MiB physical VMEM / 3.2 TB/s HBM: bigger streaming blocks to
        # amortize the ~0.35 us per-grid-step cost, while 4x double-buffered
        # blocks + kernel intermediates stay under the scoped limit.
        return {"stream_block": 6 << 20, "grouped_block": 4 << 20,
                "vmem_limit": 48 << 20}
    # v5e / v6e: 128 MiB physical VMEM; 4 MiB blocks are already ~85%+ of the
    # HBM roofline, keep a generous scoped limit.
    return {"stream_block": 4 << 20, "grouped_block": 4 << 20,
            "vmem_limit": 64 << 20}


# ------------------------------- kernels ----------------------------------- #

def _ln_rows_kernel(x_ref, w_ref, b_ref, o_ref, *, eps, inv_c):
    """LayerNorm where each kernel row is exactly one normalization group."""
    x = x_ref[...].astype(jnp.float32)                       # (bm, L)
    mean = jnp.sum(x, axis=-1, keepdims=True) * inv_c        # sum * (1/C), no divide
    xc = x - mean
    var = jnp.sum(xc * xc, axis=-1, keepdims=True) * inv_c   # biased var (torch)
    inv = jax.lax.rsqrt(var + eps)                           # EUP
    o_ref[...] = (xc * inv * w_ref[...] + b_ref[...]).astype(o_ref.dtype)


def _dot01(v, m01):
    """f32 rows @ {0,1} bf16 matrix via a 2-pass bf16 hi/lo split (DEFAULT prec).

    The 0/1 matrix is exact in bf16; hi+lo reconstructs v to ~17 mantissa bits
    and the MXU accumulates in f32, so the result is ~1e-5-relative accurate
    with only 2 bf16 passes (vs 6 for HIGHEST, 3 for HIGH).
    """
    hi = v.astype(jnp.bfloat16)
    lo = (v - hi.astype(jnp.float32)).astype(jnp.bfloat16)
    out = jnp.dot(hi, m01, preferred_element_type=jnp.float32)
    return out + jnp.dot(lo, m01, preferred_element_type=jnp.float32)


def _ln_grouped_kernel(x_ref, w_ref, b_ref, asum_ref, bcast_ref, o_ref, *,
                       eps, inv_c):
    """Lane-dense LayerNorm: each row packs G groups of C channels (L = G*C)."""
    x = x_ref[...].astype(jnp.float32)                        # (bm, L)
    a = asum_ref[...]                                         # (L, G) 0/1 bf16
    bc = bcast_ref[...]                                       # (G, L) 0/1 bf16
    mean = _dot01(x, a) * inv_c                               # (bm, G) compact
    mean_b = _dot01(mean, bc)                                 # (bm, L) broadcast
    xc = x - mean_b
    # Centered variance kept deliberately (E[x^2]-mean^2 is cancellation-prone).
    var = _dot01(xc * xc, a) * inv_c                          # (bm, G) compact
    inv = jax.lax.rsqrt(var + eps)                            # EUP on compact stats
    inv_b = _dot01(inv, bc)                                   # (bm, L) broadcast
    o_ref[...] = (xc * inv_b * w_ref[...] + b_ref[...]).astype(o_ref.dtype)


def _ln_cfirst_kernel(x_ref, w_ref, b_ref, o_ref, *, eps, inv_c):
    """channels_first LayerNorm: reduce over C (sublanes), spatial on lanes."""
    x = x_ref[...].astype(jnp.float32)                        # (C, tS)
    mean = jnp.sum(x, axis=0, keepdims=True) * inv_c          # (1, tS)
    xc = x - mean
    var = jnp.sum(xc * xc, axis=0, keepdims=True) * inv_c
    inv = jax.lax.rsqrt(var + eps)
    o_ref[...] = (xc * inv * w_ref[...] + b_ref[...]).astype(o_ref.dtype)


# ------------------------------- launchers --------------------------------- #

def _row_block(M, L, itemsize, block_bytes):
    sub = max(8, 32 // max(1, itemsize))        # 8 f32, 16 bf16, 32 int8/fp8
    bm = block_bytes // max(1, L * itemsize)
    bm = max(sub, (bm // sub) * sub)
    if bm >= M:
        bm = M                                  # full extent is always legal
    return bm


def _ln_rows_call(x2d, w_row, b_row, eps):
    """LayerNorm over the full last axis of a 2-D (M, L) array."""
    M, L = x2d.shape
    itemsize = x2d.dtype.itemsize
    tune = _device_tuning()
    bm = _row_block(M, L, itemsize, tune["stream_block"])
    grid = (pl.cdiv(M, bm),)                    # partial last block is masked
    cost = pl.CostEstimate(flops=10 * M * L, transcendentals=M,
                           bytes_accessed=2 * M * L * itemsize)
    return pl.pallas_call(
        functools.partial(_ln_rows_kernel, eps=eps, inv_c=1.0 / L),
        out_shape=jax.ShapeDtypeStruct((M, L), x2d.dtype),
        grid_spec=pltpu.PrefetchScalarGridSpec(
            num_scalar_prefetch=0,
            grid=grid,
            in_specs=[
                pl.BlockSpec((bm, L), lambda i: (i, 0)),
                pl.BlockSpec((1, L), lambda i: (0, 0)),   # constant: fetched once
                pl.BlockSpec((1, L), lambda i: (0, 0)),
            ],
            out_specs=pl.BlockSpec((bm, L), lambda i: (i, 0)),
        ),
        compiler_params=pltpu.CompilerParams(
            dimension_semantics=("parallel",),
            vmem_limit_bytes=tune["vmem_limit"]),
        cost_estimate=cost,
    )(x2d, w_row, b_row)


def _ln_grouped_call(xp, w_row, b_row, a_sum, b_cast, c, eps):
    """Lane-dense packed LayerNorm on (M', L) with L = G*C a multiple of 128."""
    Mp, L = xp.shape
    G = a_sum.shape[1]
    itemsize = xp.dtype.itemsize
    tune = _device_tuning()
    bm = _row_block(Mp, L, itemsize, tune["grouped_block"])
    grid = (pl.cdiv(Mp, bm),)
    cost = pl.CostEstimate(flops=16 * Mp * L * G + 10 * Mp * L,
                           transcendentals=Mp * G,
                           bytes_accessed=2 * Mp * L * itemsize)
    return pl.pallas_call(
        functools.partial(_ln_grouped_kernel, eps=eps, inv_c=1.0 / c),
        out_shape=jax.ShapeDtypeStruct((Mp, L), xp.dtype),
        grid_spec=pltpu.PrefetchScalarGridSpec(
            num_scalar_prefetch=0,
            grid=grid,
            in_specs=[
                pl.BlockSpec((bm, L), lambda i: (i, 0)),
                pl.BlockSpec((1, L), lambda i: (0, 0)),
                pl.BlockSpec((1, L), lambda i: (0, 0)),
                pl.BlockSpec((L, G), lambda i: (0, 0)),   # sum matrix, fetched once
                pl.BlockSpec((G, L), lambda i: (0, 0)),   # broadcast matrix
            ],
            out_specs=pl.BlockSpec((bm, L), lambda i: (i, 0)),
        ),
        compiler_params=pltpu.CompilerParams(
            dimension_semantics=("parallel",),
            vmem_limit_bytes=tune["vmem_limit"]),
        cost_estimate=cost,
    )(xp, w_row, b_row, a_sum, b_cast)


def _ln_channels_first_call(x3d, w_col, b_col, eps):
    """LayerNorm over axis 1 of (N, C, S) without any XLA transpose."""
    N, C, S = x3d.shape
    itemsize = x3d.dtype.itemsize
    tune = _device_tuning()
    ts = tune["stream_block"] // max(1, C * itemsize)
    ts = max(128, (ts // 128) * 128)
    if ts >= S:
        ts = S
    grid = (N, pl.cdiv(S, ts))
    cost = pl.CostEstimate(flops=10 * N * C * S, transcendentals=N * S,
                           bytes_accessed=2 * N * C * S * itemsize)
    return pl.pallas_call(
        functools.partial(_ln_cfirst_kernel, eps=eps, inv_c=1.0 / C),
        out_shape=jax.ShapeDtypeStruct((N, C, S), x3d.dtype),
        grid_spec=pltpu.PrefetchScalarGridSpec(
            num_scalar_prefetch=0,
            grid=grid,
            in_specs=[
                pl.BlockSpec((None, C, ts), lambda n, s: (n, 0, s)),
                pl.BlockSpec((C, 1), lambda n, s: (0, 0)),
                pl.BlockSpec((C, 1), lambda n, s: (0, 0)),
            ],
            out_specs=pl.BlockSpec((None, C, ts), lambda n, s: (n, 0, s)),
        ),
        compiler_params=pltpu.CompilerParams(
            dimension_semantics=("parallel", "parallel"),
            vmem_limit_bytes=tune["vmem_limit"]),
        cost_estimate=cost,
    )(x3d, w_col, b_col)


# ------------------------------- module ------------------------------------ #

class LayerNorm:
    """JAX/Pallas port of the LayerNorm used inside MambaEncoder."""

    def __init__(self, normalized_shape, eps=1e-6, data_format="channels_last"):
        if data_format not in ("channels_last", "channels_first"):
            raise NotImplementedError
        C = int(normalized_shape)
        self.weight = jnp.ones((C,), dtype=jnp.float32)
        self.bias = jnp.zeros((C,), dtype=jnp.float32)
        self.eps = eps
        self.data_format = data_format
        self.normalized_shape = (C,)

        # Lane-dense packing factor: smallest G with (G*C) % 128 == 0.
        self._G = 128 // math.gcd(C, 128)
        self._L = self._G * C
        self._use_grouped = (data_format == "channels_last"
                             and self._G > 1 and self._L <= _MAX_PACKED_L)
        if self._use_grouped:
            grp_of_lane = jnp.arange(self._L, dtype=jnp.int32) // C
            grp = jnp.arange(self._G, dtype=jnp.int32)
            # {0,1} matrices: exactly representable in bf16 (MXU operand dtype).
            self._a_sum = (grp_of_lane[:, None] == grp[None, :]).astype(jnp.bfloat16)
            self._b_cast = (grp[:, None] == grp_of_lane[None, :]).astype(jnp.bfloat16)
        else:
            self._a_sum = None
            self._b_cast = None
        self._param_key = None

    # Cache tiled/reshaped weight & bias; invalidates if weight/bias rebound.
    def _params(self):
        key = (id(self.weight), id(self.bias))
        if self._param_key != key:
            C = self.normalized_shape[0]
            w = self.weight.astype(jnp.float32)
            b = self.bias.astype(jnp.float32)
            self._w_row, self._b_row = w.reshape(1, C), b.reshape(1, C)
            self._w_col, self._b_col = w.reshape(C, 1), b.reshape(C, 1)
            if self._use_grouped:
                self._w_pack = jnp.tile(w, (self._G,)).reshape(1, self._L)
                self._b_pack = jnp.tile(b, (self._G,)).reshape(1, self._L)
            self._param_key = key

    def __call__(self, x):
        C = self.normalized_shape[0]
        self._params()
        if self.data_format == "channels_last":
            orig_shape = x.shape
            assert orig_shape[-1] == C
            M = 1
            for d in orig_shape[:-1]:
                M *= d
            x2d = x.reshape(M, C)
            G, L = self._G, self._L

            def grouped(rows2d):                     # rows2d.shape[0] % G == 0
                xp = rows2d.reshape(rows2d.shape[0] // G, L)   # free row-major repack
                yp = _ln_grouped_call(xp, self._w_pack, self._b_pack,
                                      self._a_sum, self._b_cast, C, self.eps)
                return yp.reshape(rows2d.shape[0], C)

            if not self._use_grouped:
                # C % 128 == 0 (e.g. dim=384): rows are lane-dense as-is.
                y = _ln_rows_call(x2d, self._w_row, self._b_row, self.eps)
            else:
                m_head = (M // G) * G
                if m_head == M:
                    y = grouped(x2d)
                elif m_head == 0:
                    y = _ln_rows_call(x2d, self._w_row, self._b_row, self.eps)
                else:
                    # Keep >99% of rows lane-dense; only the (< G)-row tail is
                    # lane-sparse.  One small concat copy on the XLA side.
                    y_head = grouped(x2d[:m_head])
                    y_tail = _ln_rows_call(x2d[m_head:], self._w_row,
                                           self._b_row, self.eps)
                    y = jnp.concatenate([y_head, y_tail], axis=0)
            return y.reshape(orig_shape)
        else:
            # channels_first: x is (N, C, *spatial); normalize over axis 1.
            assert x.ndim >= 3 and x.shape[1] == C
            N = x.shape[0]
            S = 1
            for d in x.shape[2:]:
                S *= d
            x3d = x.reshape(N, C, S)            # free reshape, no transpose
            y = _ln_channels_first_call(x3d, self._w_col, self._b_col, self.eps)
            return y.reshape(x.shape)


# ------------------------------- references -------------------------------- #

def _reference_channels_last(x, w, b, eps):
    mean = jnp.mean(x, axis=-1, keepdims=True)
    xc = x - mean
    var = jnp.mean(xc * xc, axis=-1, keepdims=True)
    return xc / jnp.sqrt(var + eps) * w + b


def _reference_channels_first(x, w, b, eps):
    u = jnp.mean(x, axis=1, keepdims=True)
    s = jnp.mean((x - u) ** 2, axis=1, keepdims=True)
    xn = (x - u) / jnp.sqrt(s + eps)
    shape = (1, -1) + (1,) * (x.ndim - 2)
    return w.reshape(shape) * xn + b.reshape(shape)


if __name__ == "__main__":
    key = jax.random.PRNGKey(0)
    k1, k2, k3, k4, k5, k6 = jax.random.split(key, 6)
    eps = 1e-6

    # ---- channels_last, C=48 (stage-0 dim, packed lane-dense path) ----
    C = 48
    ln = LayerNorm(C, eps=eps, data_format="channels_last")
    ln.weight = 1.0 + 0.1 * jax.random.normal(k3, (C,), dtype=jnp.float32)
    ln.bias = 0.05 * jax.random.normal(k4, (C,), dtype=jnp.float32)
    x = jax.random.normal(k1, (2, 512, C), dtype=jnp.float32)   # (B, n_tokens, C)
    y = jax.block_until_ready(ln(x))
    ref = _reference_channels_last(x, ln.weight, ln.bias, eps)
    assert jnp.allclose(y, ref, atol=2e-4, rtol=2e-4), "channels_last C=48 mismatch"

    # ---- channels_last, C=384 (stage-3 dim, lane-dense without packing) ----
    C2 = 384
    ln2 = LayerNorm(C2, eps=eps, data_format="channels_last")
    ln2.weight = 1.0 + 0.1 * jax.random.normal(k5, (C2,), dtype=jnp.float32)
    ln2.bias = 0.05 * jax.random.normal(k6, (C2,), dtype=jnp.float32)
    x2 = jax.random.normal(k2, (2, 64, C2), dtype=jnp.float32)
    y2 = jax.block_until_ready(ln2(x2))
    ref2 = _reference_channels_last(x2, ln2.weight, ln2.bias, eps)
    assert jnp.allclose(y2, ref2, atol=2e-4, rtol=2e-4), "channels_last C=384 mismatch"

    # ---- channels_last, ragged row count (head grouped + tiny lane-sparse tail) ----
    x3 = jax.random.normal(k1, (1, 100, C), dtype=jnp.float32)
    y3 = jax.block_until_ready(ln(x3))
    ref3 = _reference_channels_last(x3, ln.weight, ln.bias, eps)
    assert jnp.allclose(y3, ref3, atol=2e-4, rtol=2e-4), "channels_last ragged mismatch"

    # ---- channels_first, (N, C, D, H, W), no XLA transpose ----
    lnf = LayerNorm(C, eps=eps, data_format="channels_first")
    lnf.weight = ln.weight
    lnf.bias = ln.bias
    xf = jax.random.normal(k2, (2, C, 4, 8, 8), dtype=jnp.float32)
    yf = jax.block_until_ready(lnf(xf))
    reff = _reference_channels_first(xf, lnf.weight, lnf.bias, eps)
    assert jnp.allclose(yf, reff, atol=2e-4, rtol=2e-4), "channels_first mismatch"

    print("KERNEL_OK")
</pallas_src>

<mosaic_0001>
module attributes {stable_mosaic.version = 11 : i64} {
  func.func @_ln_grouped_kernel(%arg0: i32, %arg1: memref<128x384xf32, #tpu.memory_space<vmem>>, %arg2: memref<1x384xf32, #tpu.memory_space<vmem>>, %arg3: memref<1x384xf32, #tpu.memory_space<vmem>>, %arg4: memref<384x8xbf16, #tpu.memory_space<vmem>>, %arg5: memref<8x384xbf16, #tpu.memory_space<vmem>>, %arg6: memref<128x384xf32, #tpu.memory_space<vmem>>) attributes {dimension_semantics = [#tpu.dimension_semantics<parallel>], iteration_bounds = array<i64: 1>, scalar_prefetch = 0 : i64, scratch_operands = 0 : i64, tpu.core_type = #tpu.core_type<tc>, window_params = [{transform_indices = @transform_0, window_bounds = array<i64: 128, 384>}, {pipeline_mode = #tpu.pipeline_mode<synchronous>, transform_indices = @transform_1, window_bounds = array<i64: 1, 384>}, {pipeline_mode = #tpu.pipeline_mode<synchronous>, transform_indices = @transform_2, window_bounds = array<i64: 1, 384>}, {pipeline_mode = #tpu.pipeline_mode<synchronous>, transform_indices = @transform_3, window_bounds = array<i64: 384, 8>}, {pipeline_mode = #tpu.pipeline_mode<synchronous>, transform_indices = @transform_4, window_bounds = array<i64: 8, 384>}, {transform_indices = @transform_5, window_bounds = array<i64: 128, 384>}]} {
    %c0 = arith.constant 0 : index
    %c0_0 = arith.constant 0 : index
    %0 = vector.load %arg1[%c0, %c0_0] : memref<128x384xf32, #tpu.memory_space<vmem>>, vector<128x384xf32>
    %c0_1 = arith.constant 0 : index
    %c0_2 = arith.constant 0 : index
    %1 = vector.load %arg4[%c0_1, %c0_2] : memref<384x8xbf16, #tpu.memory_space<vmem>>, vector<384x8xbf16>
    %c0_3 = arith.constant 0 : index
    %c0_4 = arith.constant 0 : index
    %2 = vector.load %arg5[%c0_3, %c0_4] : memref<8x384xbf16, #tpu.memory_space<vmem>>, vector<8x384xbf16>
    %3 = arith.truncf %0 : vector<128x384xf32> to vector<128x384xbf16>
    %4 = arith.extf %3 : vector<128x384xbf16> to vector<128x384xf32>
    %5 = arith.subf %0, %4 : vector<128x384xf32>
    %6 = arith.truncf %5 : vector<128x384xf32> to vector<128x384xbf16>
    %cst = arith.constant dense<0.000000e+00> : vector<128x8xf32>
    %7 = tpu.matmul %3, %1, %cst {dimension_numbers = #tpu.dot_dimension_numbers<[1], [0], [0], [1], [0, 0, 1, 1], [], []>} : vector<128x384xbf16>, vector<384x8xbf16>, vector<128x8xf32> -> vector<128x8xf32>
    %cst_5 = arith.constant dense<0.000000e+00> : vector<128x8xf32>
    %8 = tpu.matmul %6, %1, %cst_5 {dimension_numbers = #tpu.dot_dimension_numbers<[1], [0], [0], [1], [0, 0, 1, 1], [], []>} : vector<128x384xbf16>, vector<384x8xbf16>, vector<128x8xf32> -> vector<128x8xf32>
    %9 = arith.addf %7, %8 : vector<128x8xf32>
    %cst_6 = arith.constant 0.020833334 : f32
    %10 = vector.broadcast %cst_6 : f32 to vector<128x8xf32>
    %11 = arith.mulf %9, %10 : vector<128x8xf32>
    %12 = arith.truncf %11 : vector<128x8xf32> to vector<128x8xbf16>
    %13 = arith.extf %12 : vector<128x8xbf16> to vector<128x8xf32>
    %14 = arith.subf %11, %13 : vector<128x8xf32>
    %15 = arith.truncf %14 : vector<128x8xf32> to vector<128x8xbf16>
    %cst_7 = arith.constant dense<0.000000e+00> : vector<128x384xf32>
    %16 = tpu.matmul %12, %2, %cst_7 {dimension_numbers = #tpu.dot_dimension_numbers<[1], [0], [0], [1], [0, 0, 1, 1], [], []>} : vector<128x8xbf16>, vector<8x384xbf16>, vector<128x384xf32> -> vector<128x384xf32>
    %cst_8 = arith.constant dense<0.000000e+00> : vector<128x384xf32>
    %17 = tpu.matmul %15, %2, %cst_8 {dimension_numbers = #tpu.dot_dimension_numbers<[1], [0], [0], [1], [0, 0, 1, 1], [], []>} : vector<128x8xbf16>, vector<8x384xbf16>, vector<128x384xf32> -> vector<128x384xf32>
    %18 = arith.addf %16, %17 : vector<128x384xf32>
    %19 = arith.subf %0, %18 : vector<128x384xf32>
    %20 = arith.mulf %19, %19 : vector<128x384xf32>
    %21 = arith.truncf %20 : vector<128x384xf32> to vector<128x384xbf16>
    %22 = arith.extf %21 : vector<128x384xbf16> to vector<128x384xf32>
    %23 = arith.subf %20, %22 : vector<128x384xf32>
    %24 = arith.truncf %23 : vector<128x384xf32> to vector<128x384xbf16>
    %cst_9 = arith.constant dense<0.000000e+00> : vector<128x8xf32>
    %25 = tpu.matmul %21, %1, %cst_9 {dimension_numbers = #tpu.dot_dimension_numbers<[1], [0], [0], [1], [0, 0, 1, 1], [], []>} : vector<128x384xbf16>, vector<384x8xbf16>, vector<128x8xf32> -> vector<128x8xf32>
    %cst_10 = arith.constant dense<0.000000e+00> : vector<128x8xf32>
    %26 = tpu.matmul %24, %1, %cst_10 {dimension_numbers = #tpu.dot_dimension_numbers<[1], [0], [0], [1], [0, 0, 1, 1], [], []>} : vector<128x384xbf16>, vector<384x8xbf16>, vector<128x8xf32> -> vector<128x8xf32>
    %27 = arith.addf %25, %26 : vector<128x8xf32>
    %cst_11 = arith.constant 0.020833334 : f32
    %28 = vector.broadcast %cst_11 : f32 to vector<128x8xf32>
    %29 = arith.mulf %27, %28 : vector<128x8xf32>
    %cst_12 = arith.constant 9.99999997E-7 : f32
    %30 = vector.broadcast %cst_12 : f32 to vector<128x8xf32>
    %31 = arith.addf %29, %30 : vector<128x8xf32>
    %32 = math.rsqrt %31 : vector<128x8xf32>
    %33 = arith.truncf %32 : vector<128x8xf32> to vector<128x8xbf16>
    %34 = arith.extf %33 : vector<128x8xbf16> to vector<128x8xf32>
    %35 = arith.subf %32, %34 : vector<128x8xf32>
    %36 = arith.truncf %35 : vector<128x8xf32> to vector<128x8xbf16>
    %cst_13 = arith.constant dense<0.000000e+00> : vector<128x384xf32>
    %37 = tpu.matmul %33, %2, %cst_13 {dimension_numbers = #tpu.dot_dimension_numbers<[1], [0], [0], [1], [0, 0, 1, 1], [], []>} : vector<128x8xbf16>, vector<8x384xbf16>, vector<128x384xf32> -> vector<128x384xf32>
    %cst_14 = arith.constant dense<0.000000e+00> : vector<128x384xf32>
    %38 = tpu.matmul %36, %2, %cst_14 {dimension_numbers = #tpu.dot_dimension_numbers<[1], [0], [0], [1], [0, 0, 1, 1], [], []>} : vector<128x8xbf16>, vector<8x384xbf16>, vector<128x384xf32> -> vector<128x384xf32>
    %39 = arith.addf %37, %38 : vector<128x384xf32>
    %40 = arith.mulf %19, %39 : vector<128x384xf32>
    %c0_15 = arith.constant 0 : index
    %c0_16 = arith.constant 0 : index
    %41 = vector.load %arg2[%c0_15, %c0_16] : memref<1x384xf32, #tpu.memory_space<vmem>>, vector<1x384xf32>
    %42 = vector.broadcast %41 : vector<1x384xf32> to vector<128x384xf32>
    %43 = arith.mulf %40, %42 : vector<128x384xf32>
    %c0_17 = arith.constant 0 : index
    %c0_18 = arith.constant 0 : index
    %44 = vector.load %arg3[%c0_17, %c0_18] : memref<1x384xf32, #tpu.memory_space<vmem>>, vector<1x384xf32>
    %45 = vector.broadcast %44 : vector<1x384xf32> to vector<128x384xf32>
    %46 = arith.addf %43, %45 : vector<128x384xf32>
    %c0_19 = arith.constant 0 : index
    %c0_20 = arith.constant 0 : index
    %47 = vector.load %arg6[%c0_19, %c0_20] : memref<128x384xf32, #tpu.memory_space<vmem>>, vector<128x384xf32>
    tpu.vector_store %arg6[%c0_19, %c0_20], %46 {strides = array<i32>} : memref<128x384xf32, #tpu.memory_space<vmem>>, vector<128x384xf32>,
    return
  }
  func.func @transform_0(%arg0: i32) -> (i32, i32) {
    %c0_i32 = arith.constant 0 : i32
    %c0_i32_0 = arith.constant 0 : i32
    return %arg0, %c0_i32 : i32, i32
  }
  func.func @transform_1(%arg0: i32) -> (i32, i32) {
    %c0_i32 = arith.constant 0 : i32
    %c0_i32_0 = arith.constant 0 : i32
    %c0_i32_1 = arith.constant 0 : i32
    return %c0_i32, %c0_i32_0 : i32, i32
  }
  func.func @transform_2(%arg0: i32) -> (i32, i32) {
    %c0_i32 = arith.constant 0 : i32
    %c0_i32_0 = arith.constant 0 : i32
    %c0_i32_1 = arith.constant 0 : i32
    return %c0_i32, %c0_i32_0 : i32, i32
  }
  func.func @transform_3(%arg0: i32) -> (i32, i32) {
    %c0_i32 = arith.constant 0 : i32
    %c0_i32_0 = arith.constant 0 : i32
    %c0_i32_1 = arith.constant 0 : i32
    return %c0_i32, %c0_i32_0 : i32, i32
  }
  func.func @transform_4(%arg0: i32) -> (i32, i32) {
    %c0_i32 = arith.constant 0 : i32
    %c0_i32_0 = arith.constant 0 : i32
    %c0_i32_1 = arith.constant 0 : i32
    return %c0_i32, %c0_i32_0 : i32, i32
  }
  func.func @transform_5(%arg0: i32) -> (i32, i32) {
    %c0_i32 = arith.constant 0 : i32
    %c0_i32_0 = arith.constant 0 : i32
    return %arg0, %c0_i32 : i32, i32
  }
}

</mosaic_0001>

<llo_original>
// kernel: tpu_custom_call.1
$region0: #{tpu_custom_call.1}
  #allocation0 [shape = 'u32[]', space=smem, size = 0x4, offset = 0x4, fixed_abs, tag = 'smem constant byte address 0x4 - core index']
  #allocation1 [shape = 'u32[144,128]{1,0:T(1,128)}', space=vmem, size = 0x12000, scoped, tag = 'internal scratch']
  %s0 = inlined_call_operand.hbm [shape: f32[128,384], index: 0, kind: input, shape index: {}]
  %s1 = inlined_call_operand.hbm [shape: f32[1,384], index: 1, kind: input, shape index: {}]
  %s2 = inlined_call_operand.hbm [shape: f32[1,384], index: 2, kind: input, shape index: {}]
  %s3 = inlined_call_operand.hbm [shape: bf16[384,8], index: 3, kind: input, shape index: {}]
  %s4 = inlined_call_operand.hbm [shape: bf16[8,384], index: 4, kind: input, shape index: {}]
  %s5 = inlined_call_operand.hbm [shape: f32[128,384], index: 5, kind: output, shape index: {}]
  %s6 = sld [smem:[#allocation0]]
  $region50: #{tpu_custom_call.1} parent=0
    _
  %s8 = ssub.s32 1, %s6
  %s9 = scalar_select 0, %s8, %s6
  $region1: #{tpu_custom_call.1} parent=0
    #allocation2 [shape = 'u8[196608]{0}', space=vmem, size = 0x30000, scoped, tag = 'input window, operand 0, single buffered']
    #allocation3 [shape = 's32[1]{0}', space=sflag, size = 0x4, scoped, tag = 'scoped memory for tpu_custom_call.1']
    #allocation4 [shape = 's32[1]{0}', space=sflag, size = 0x4, scoped, tag = 'scoped memory for tpu_custom_call.1']
    #allocation5 [shape = 'u8[1536]{0}', space=vmem, size = 0x800, scoped, tag = 'input window, operand 1, single buffered']
    #allocation6 [shape = 's32[1]{0}', space=sflag, size = 0x4, scoped, tag = 'scoped memory for tpu_custom_call.1']
    #allocation7 [shape = 'u8[1536]{0}', space=vmem, size = 0x800, scoped, tag = 'input window, operand 2, single buffered']
    #allocation8 [shape = 'u8[98304]{0}', space=vmem, size = 0x18000, scoped, tag = 'input window, operand 3, single buffered']
    #allocation9 [shape = 's32[1]{0}', space=sflag, size = 0x4, scoped, tag = 'scoped memory for tpu_custom_call.1']
    #allocation10 [shape = 'u8[6144]{0}', space=vmem, size = 0x1800, scoped, tag = 'input window, operand 4, single buffered']
    #allocation11 [shape = 'u8[196608]{0}', space=vmem, size = 0x30000, scoped, tag = 'output window, operand 0, single buffered']
    %10 = vsyncpa [#allocation3], 0
    %11 = vsyncpa [#allocation6], 0
    %12 = vsyncpa [#allocation9], 0
    %13 = vsyncpa [#allocation4], 0
    // Predicated region
    $region2: #{tpu_custom_call.1} parent=1 // pred_check
      _
    $region3: #{tpu_custom_call.1} parent=1 // pred_check_branch
      %15 = sbr.rel (0) target = $region5
    $region4: #{tpu_custom_call.1} parent=1 // pred_region
      %s17 = ssub.s32 6144, 6144
      %18 = vsyncadd [#allocation3], %s17
      %s19 = sshll.u32 [#allocation2], 4
      %s20 = int_to_ptr.vmem [resolvable:$true] %s19
      %25 = dma.hbm_to_vmem [thread:$0]  %s0, 6144, %s20, [#allocation3], 384, 384, 24
    $region5: #{tpu_custom_call.1} parent=1 // pred_fallthru
      _
    // Predicated region
    $region6: #{tpu_custom_call.1} parent=1 // pred_check
      _
    $region7: #{tpu_custom_call.1} parent=1 // pred_check_branch
      %27 = sbr.rel (0) target = $region9
    $region8: #{tpu_custom_call.1} parent=1 // pred_region
      %s29 = ssub.s32 48, 48
      %30 = vsyncadd [#allocation6], %s29
      %s32 = sshll.u32 [#allocation5], 4
      %s33 = int_to_ptr.vmem [resolvable:$true] %s32
      %35 = dma.hbm_to_vmem [thread:$0]  %s1, 48, %s33, [#allocation6]
    $region9: #{tpu_custom_call.1} parent=1 // pred_fallthru
      _
    // Predicated region
    $region10: #{tpu_custom_call.1} parent=1 // pred_check
      _
    $region11: #{tpu_custom_call.1} parent=1 // pred_check_branch
      %37 = sbr.rel (0) target = $region13
    $region12: #{tpu_custom_call.1} parent=1 // pred_region
      %s39 = ssub.s32 48, 48
      %40 = vsyncadd [#allocation6], %s39
      %s42 = sshll.u32 [#allocation7], 4
      %s43 = int_to_ptr.vmem [resolvable:$true] %s42
      %45 = dma.hbm_to_vmem [thread:$0]  %s2, 48, %s43, [#allocation6]
    $region13: #{tpu_custom_call.1} parent=1 // pred_fallthru
      _
    // Predicated region
    $region14: #{tpu_custom_call.1} parent=1 // pred_check
      _
    $region15: #{tpu_custom_call.1} parent=1 // pred_check_branch
      %47 = sbr.rel (0) target = $region17
    $region16: #{tpu_custom_call.1} parent=1 // pred_region
      %s49 = ssub.s32 3072, 3072
      %50 = vsyncadd [#allocation9], %s49
      %s51 = sshll.u32 [#allocation8], 4
      %s52 = int_to_ptr.vmem [resolvable:$true] %s51
      %57 = dma.hbm_to_vmem [thread:$0]  %s3, 3072, %s52, [#allocation9], 64, 64, 4
    $region17: #{tpu_custom_call.1} parent=1 // pred_fallthru
      _
    // Predicated region
    $region18: #{tpu_custom_call.1} parent=1 // pred_check
      _
    $region19: #{tpu_custom_call.1} parent=1 // pred_check_branch
      %59 = sbr.rel (0) target = $region21
    $region20: #{tpu_custom_call.1} parent=1 // pred_region
      %s61 = ssub.s32 192, 192
      %62 = vsyncadd [#allocation9], %s61
      %s64 = sshll.u32 [#allocation10], 4
      %s65 = int_to_ptr.vmem [resolvable:$true] %s64
      %67 = dma.hbm_to_vmem [thread:$0]  %s4, 192, %s65, [#allocation9]
    $region21: #{tpu_custom_call.1} parent=1 // pred_fallthru
      _
    // Predicated region
    $region22: #{tpu_custom_call.1} parent=1 // pred_check
      _
    $region23: #{tpu_custom_call.1} parent=1 // pred_check_branch
      %69 = sbr.rel (0) target = $region25
    $region24: #{tpu_custom_call.1} parent=1 // pred_region
      %70 = dma.done [#allocation3], 6144
    $region25: #{tpu_custom_call.1} parent=1 // pred_fallthru
      _
    // Predicated region
    $region26: #{tpu_custom_call.1} parent=1 // pred_check
      _
    $region27: #{tpu_custom_call.1} parent=1 // pred_check_branch
      %72 = sbr.rel (0) target = $region29
    $region28: #{tpu_custom_call.1} parent=1 // pred_region
      %73 = dma.done [#allocation6], 48
    $region29: #{tpu_custom_call.1} parent=1 // pred_fallthru
      _
    // Predicated region
    $region30: #{tpu_custom_call.1} parent=1 // pred_check
      _
    $region31: #{tpu_custom_call.1} parent=1 // pred_check_branch
      %75 = sbr.rel (0) target = $region33
    $region32: #{tpu_custom_call.1} parent=1 // pred_region
      %76 = dma.done [#allocation6], 48
    $region33: #{tpu_custom_call.1} parent=1 // pred_fallthru
      _
    // Predicated region
    $region34: #{tpu_custom_call.1} parent=1 // pred_check
      _
    $region35: #{tpu_custom_call.1} parent=1 // pred_check_branch
      %78 = sbr.rel (0) target = $region37
    $region36: #{tpu_custom_call.1} parent=1 // pred_region
      %79 = dma.done [#allocation9], 3072
    $region37: #{tpu_custom_call.1} parent=1 // pred_fallthru
      _
    // Predicated region
    $region38: #{tpu_custom_call.1} parent=1 // pred_check
      _
    $region39: #{tpu_custom_call.1} parent=1 // pred_check_branch
      %81 = sbr.rel (0) target = $region41
    $region40: #{tpu_custom_call.1} parent=1 // pred_region
      %82 = dma.done [#allocation9], 192
    $region41: #{tpu_custom_call.1} parent=1 // pred_fallthru
      _
    %v84 = vld [vmem:[#allocation2] sm:$0xff]
    %v85 = vld [vmem:[#allocation2 + $0x8] sm:$0xff]
    %v86 = vld [vmem:[#allocation2 + $0x10] sm:$0xff]
    %v87 = vld [vmem:[#allocation2 + $0x18] sm:$0xff]
    %v88 = vld [vmem:[#allocation2 + $0x20] sm:$0xff]
    %v89 = vld [vmem:[#allocation2 + $0x28] sm:$0xff]
    %v90 = vld [vmem:[#allocation2 + $0x30] sm:$0xff]
    %v91 = vld [vmem:[#allocation2 + $0x38] sm:$0xff]
    %v92 = vld [vmem:[#allocation2 + $0x40] sm:$0xff]
    %v93 = vld [vmem:[#allocation2 + $0x48] sm:$0xff]
    %v94 = vld [vmem:[#allocation2 + $0x50] sm:$0xff]
    %v95 = vld [vmem:[#allocation2 + $0x58] sm:$0xff]
    %v96 = vld [vmem:[#allocation2 + $0x60] sm:$0xff]
    %v97 = vld [vmem:[#allocation2 + $0x68] sm:$0xff]
    %v98 = vld [vmem:[#allocation2 + $0x70] sm:$0xff]
    %v99 = vld [vmem:[#allocation2 + $0x78] sm:$0xff]
    %v100 = vld [vmem:[#allocation2 + $0x80] sm:$0xff]
    %v101 = vld [vmem:[#allocation2 + $0x88] sm:$0xff]
    %v102 = vld [vmem:[#allocation2 + $0x90] sm:$0xff]
    %v103 = vld [vmem:[#allocation2 + $0x98] sm:$0xff]
    %v104 = vld [vmem:[#allocation2 + $0xa0] sm:$0xff]
    %v105 = vld [vmem:[#allocation2 + $0xa8] sm:$0xff]
    %v106 = vld [vmem:[#allocation2 + $0xb0] sm:$0xff]
    %v107 = vld [vmem:[#allocation2 + $0xb8] sm:$0xff]
    %v108 = vld [vmem:[#allocation2 + $0xc0] sm:$0xff]
    %v109 = vld [vmem:[#allocation2 + $0xc8] sm:$0xff]
    %v110 = vld [vmem:[#allocation2 + $0xd0] sm:$0xff]
    %v111 = vld [vmem:[#allocation2 + $0xd8] sm:$0xff]
    %v112 = vld [vmem:[#allocation2 + $0xe0] sm:$0xff]
    %v113 = vld [vmem:[#allocation2 + $0xe8] sm:$0xff]
    %v114 = vld [vmem:[#allocation2 + $0xf0] sm:$0xff]
    %v115 = vld [vmem:[#allocation2 + $0xf8] sm:$0xff]
    %v116 = vld [vmem:[#allocation2 + $0x100] sm:$0xff]
    %v117 = vld [vmem:[#allocation2 + $0x108] sm:$0xff]
    %v118 = vld [vmem:[#allocation2 + $0x110] sm:$0xff]
    %v119 = vld [vmem:[#allocation2 + $0x118] sm:$0xff]
    %v120 = vld [vmem:[#allocation2 + $0x120] sm:$0xff]
    %v121 = vld [vmem:[#allocation2 + $0x128] sm:$0xff]
    %v122 = vld [vmem:[#allocation2 + $0x130] sm:$0xff]
    %v123 = vld [vmem:[#allocation2 + $0x138] sm:$0xff]
    %v124 = vld [vmem:[#allocation2 + $0x140] sm:$0xff]
    %v125 = vld [vmem:[#allocation2 + $0x148] sm:$0xff]
    %v126 = vld [vmem:[#allocation2 + $0x150] sm:$0xff]
    %v127 = vld [vmem:[#allocation2 + $0x158] sm:$0xff]
    %v128 = vld [vmem:[#allocation2 + $0x160] sm:$0xff]
    %v129 = vld [vmem:[#allocation2 + $0x168] sm:$0xff]
    %v130 = vld [vmem:[#allocation2 + $0x170] sm:$0xff]
    %v131 = vld [vmem:[#allocation2 + $0x178] sm:$0xff]
    %v132 = vld [vmem:[#allocation8] sm:$0xf]
    %v133 = vld [vmem:[#allocation8 + $0x4] sm:$0xf]
    %v134 = vld [vmem:[#allocation8 + $0x8] sm:$0xf]
    %v135 = vld [vmem:[#allocation8 + $0xc] sm:$0xf]
    %v136 = vld [vmem:[#allocation8 + $0x10] sm:$0xf]
    %v137 = vld [vmem:[#allocation8 + $0x14] sm:$0xf]
    %v138 = vld [vmem:[#allocation8 + $0x18] sm:$0xf]
    %v139 = vld [vmem:[#allocation8 + $0x1c] sm:$0xf]
    %v140 = vld [vmem:[#allocation8 + $0x20] sm:$0xf]
    %v141 = vld [vmem:[#allocation8 + $0x24] sm:$0xf]
    %v142 = vld [vmem:[#allocation8 + $0x28] sm:$0xf]
    %v143 = vld [vmem:[#allocation8 + $0x2c] sm:$0xf]
    %v144 = vld [vmem:[#allocation8 + $0x30] sm:$0xf]
    %v145 = vld [vmem:[#allocation8 + $0x34] sm:$0xf]
    %v146 = vld [vmem:[#allocation8 + $0x38] sm:$0xf]
    %v147 = vld [vmem:[#allocation8 + $0x3c] sm:$0xf]
    %v148 = vld [vmem:[#allocation8 + $0x40] sm:$0xf]
    %v149 = vld [vmem:[#allocation8 + $0x44] sm:$0xf]
    %v150 = vld [vmem:[#allocation8 + $0x48] sm:$0xf]
    %v151 = vld [vmem:[#allocation8 + $0x4c] sm:$0xf]
    %v152 = vld [vmem:[#allocation8 + $0x50] sm:$0xf]
    %v153 = vld [vmem:[#allocation8 + $0x54] sm:$0xf]
    %v154 = vld [vmem:[#allocation8 + $0x58] sm:$0xf]
    %v155 = vld [vmem:[#allocation8 + $0x5c] sm:$0xf]
    %v156 = vld [vmem:[#allocation8 + $0x60] sm:$0xf]
    %v157 = vld [vmem:[#allocation8 + $0x64] sm:$0xf]
    %v158 = vld [vmem:[#allocation8 + $0x68] sm:$0xf]
    %v159 = vld [vmem:[#allocation8 + $0x6c] sm:$0xf]
    %v160 = vld [vmem:[#allocation8 + $0x70] sm:$0xf]
    %v161 = vld [vmem:[#allocation8 + $0x74] sm:$0xf]
    %v162 = vld [vmem:[#allocation8 + $0x78] sm:$0xf]
    %v163 = vld [vmem:[#allocation8 + $0x7c] sm:$0xf]
    %v164 = vld [vmem:[#allocation8 + $0x80] sm:$0xf]
    %v165 = vld [vmem:[#allocation8 + $0x84] sm:$0xf]
    %v166 = vld [vmem:[#allocation8 + $0x88] sm:$0xf]
    %v167 = vld [vmem:[#allocation8 + $0x8c] sm:$0xf]
    %v168 = vld [vmem:[#allocation8 + $0x90] sm:$0xf]
    %v169 = vld [vmem:[#allocation8 + $0x94] sm:$0xf]
    %v170 = vld [vmem:[#allocation8 + $0x98] sm:$0xf]
    %v171 = vld [vmem:[#allocation8 + $0x9c] sm:$0xf]
    %v172 = vld [vmem:[#allocation8 + $0xa0] sm:$0xf]
    %v173 = vld [vmem:[#allocation8 + $0xa4] sm:$0xf]
    %v174 = vld [vmem:[#allocation8 + $0xa8] sm:$0xf]
    %v175 = vld [vmem:[#allocation8 + $0xac] sm:$0xf]
    %v176 = vld [vmem:[#allocation8 + $0xb0] sm:$0xf]
    %v177 = vld [vmem:[#allocation8 + $0xb4] sm:$0xf]
    %v178 = vld [vmem:[#allocation8 + $0xb8] sm:$0xf]
    %v179 = vld [vmem:[#allocation8 + $0xbc] sm:$0xf]
    %v180 = vld [vmem:[#allocation10] sm:$0xff]
    %v181 = vld [vmem:[#allocation10 + $0x8] sm:$0xf]
    %v182 = vpack.c.bf16 %v87, %v84
    %v183 = vpack.c.bf16 %v88, %v85
    %v184 = vpack.c.bf16 %v89, %v86
    %v185 = vpack.c.bf16 %v93, %v90
    %v186 = vpack.c.bf16 %v94, %v91
    %v187 = vpack.c.bf16 %v95, %v92
    %v188 = vpack.c.bf16 %v99, %v96
    %v189 = vpack.c.bf16 %v100, %v97
    %v190 = vpack.c.bf16 %v101, %v98
    %v191 = vpack.c.bf16 %v105, %v102
    %v192 = vpack.c.bf16 %v106, %v103
    %v193 = vpack.c.bf16 %v107, %v104
    %v194 = vpack.c.bf16 %v111, %v108
    %v195 = vpack.c.bf16 %v112, %v109
    %v196 = vpack.c.bf16 %v113, %v110
    %v197 = vpack.c.bf16 %v117, %v114
    %v198 = vpack.c.bf16 %v118, %v115
    %v199 = vpack.c.bf16 %v119, %v116
    %v200 = vpack.c.bf16 %v123, %v120
    %v201 = vpack.c.bf16 %v124, %v121
    %v202 = vpack.c.bf16 %v125, %v122
    %v203 = vpack.c.bf16 %v129, %v126
    %v204 = vpack.c.bf16 %v130, %v127
    %v205 = vpack.c.bf16 %v131, %v128
    %v206 = vunpack.c.l.bf16 %v182
    %v207 = vunpack.c.l.bf16 %v183
    %v208 = vunpack.c.l.bf16 %v184
    %v209 = vunpack.c.h.bf16 %v182
    %v210 = vunpack.c.h.bf16 %v183
    %v211 = vunpack.c.h.bf16 %v184
    %v212 = vunpack.c.l.bf16 %v185
    %v213 = vunpack.c.l.bf16 %v186
    %v214 = vunpack.c.l.bf16 %v187
    %v215 = vunpack.c.h.bf16 %v185
    %v216 = vunpack.c.h.bf16 %v186
    %v217 = vunpack.c.h.bf16 %v187
    %v218 = vunpack.c.l.bf16 %v188
    %v219 = vunpack.c.l.bf16 %v189
    %v220 = vunpack.c.l.bf16 %v190
    %v221 = vunpack.c.h.bf16 %v188
    %v222 = vunpack.c.h.bf16 %v189
    %v223 = vunpack.c.h.bf16 %v190
    %v224 = vunpack.c.l.bf16 %v191
    %v225 = vunpack.c.l.bf16 %v192
    %v226 = vunpack.c.l.bf16 %v193
    %v227 = vunpack.c.h.bf16 %v191
    %v228 = vunpack.c.h.bf16 %v192
    %v229 = vunpack.c.h.bf16 %v193
    %v230 = vunpack.c.l.bf16 %v194
    %v231 = vunpack.c.l.bf16 %v195
    %v232 = vunpack.c.l.bf16 %v196
    %v233 = vunpack.c.h.bf16 %v194
    %v234 = vunpack.c.h.bf16 %v195
    %v235 = vunpack.c.h.bf16 %v196
    %v236 = vunpack.c.l.bf16 %v197
    %v237 = vunpack.c.l.bf16 %v198
    %v238 = vunpack.c.l.bf16 %v199
    %v239 = vunpack.c.h.bf16 %v197
    %v240 = vunpack.c.h.bf16 %v198
    %v241 = vunpack.c.h.bf16 %v199
    %v242 = vunpack.c.l.bf16 %v200
    %v243 = vunpack.c.l.bf16 %v201
    %v244 = vunpack.c.l.bf16 %v202
    %v245 = vunpack.c.h.bf16 %v200
    %v246 = vunpack.c.h.bf16 %v201
    %v247 = vunpack.c.h.bf16 %v202
    %v248 = vunpack.c.l.bf16 %v203
    %v249 = vunpack.c.l.bf16 %v204
    %v250 = vunpack.c.l.bf16 %v205
    %v251 = vunpack.c.h.bf16 %v203
    %v252 = vunpack.c.h.bf16 %v204
    %v253 = vunpack.c.h.bf16 %v205
    %v254 = vsub.f32 %v84, %v206
    %v255 = vsub.f32 %v85, %v207
    %v256 = vsub.f32 %v86, %v208
    %v257 = vsub.f32 %v87, %v209
    %v258 = vsub.f32 %v88, %v210
    %v259 = vsub.f32 %v89, %v211
    %v260 = vsub.f32 %v90, %v212
    %v261 = vsub.f32 %v91, %v213
    %v262 = vsub.f32 %v92, %v214
    %v263 = vsub.f32 %v93, %v215
    %v264 = vsub.f32 %v94, %v216
    %v265 = vsub.f32 %v95, %v217
    %v266 = vsub.f32 %v96, %v218
    %v267 = vsub.f32 %v97, %v219
    %v268 = vsub.f32 %v98, %v220
    %v269 = vsub.f32 %v99, %v221
    %v270 = vsub.f32 %v100, %v222
    %v271 = vsub.f32 %v101, %v223
    %v272 = vsub.f32 %v102, %v224
    %v273 = vsub.f32 %v103, %v225
    %v274 = vsub.f32 %v104, %v226
    %v275 = vsub.f32 %v105, %v227
    %v276 = vsub.f32 %v106, %v228
    %v277 = vsub.f32 %v107, %v229
    %v278 = vsub.f32 %v108, %v230
    %v279 = vsub.f32 %v109, %v231
    %v280 = vsub.f32 %v110, %v232
    %v281 = vsub.f32 %v111, %v233
    %v282 = vsub.f32 %v112, %v234
    %v283 = vsub.f32 %v113, %v235
    %v284 = vsub.f32 %v114, %v236
    %v285 = vsub.f32 %v115, %v237
    %v286 = vsub.f32 %v116, %v238
    %v287 = vsub.f32 %v117, %v239
    %v288 = vsub.f32 %v118, %v240
    %v289 = vsub.f32 %v119, %v241
    %v290 = vsub.f32 %v120, %v242
    %v291 = vsub.f32 %v121, %v243
    %v292 = vsub.f32 %v122, %v244
    %v293 = vsub.f32 %v123, %v245
    %v294 = vsub.f32 %v124, %v246
    %v295 = vsub.f32 %v125, %v247
    %v296 = vsub.f32 %v126, %v248
    %v297 = vsub.f32 %v127, %v249
    %v298 = vsub.f32 %v128, %v250
    %v299 = vsub.f32 %v129, %v251
    %v300 = vsub.f32 %v130, %v252
    %v301 = vsub.f32 %v131, %v253
    %v302 = vpack.c.bf16 %v257, %v254
    %v303 = vpack.c.bf16 %v258, %v255
    %v304 = vpack.c.bf16 %v259, %v256
    %v305 = vpack.c.bf16 %v263, %v260
    %v306 = vpack.c.bf16 %v264, %v261
    %v307 = vpack.c.bf16 %v265, %v262
    %v308 = vpack.c.bf16 %v269, %v266
    %v309 = vpack.c.bf16 %v270, %v267
    %v310 = vpack.c.bf16 %v271, %v268
    %v311 = vpack.c.bf16 %v275, %v272
    %v312 = vpack.c.bf16 %v276, %v273
    %v313 = vpack.c.bf16 %v277, %v274
    %v314 = vpack.c.bf16 %v281, %v278
    %v315 = vpack.c.bf16 %v282, %v279
    %v316 = vpack.c.bf16 %v283, %v280
    %v317 = vpack.c.bf16 %v287, %v284
    %v318 = vpack.c.bf16 %v288, %v285
    %v319 = vpack.c.bf16 %v289, %v286
    %v320 = vpack.c.bf16 %v293, %v290
    %v321 = vpack.c.bf16 %v294, %v291
    %v322 = vpack.c.bf16 %v295, %v292
    %v323 = vpack.c.bf16 %v299, %v296
    %v324 = vpack.c.bf16 %v300, %v297
    %v325 = vpack.c.bf16 %v301, %v298
    %v374 = vunpack.c.l.b16 %v132
    %v375 = vunpack.c.l.b16 %v133
    %v376 = vunpack.c.l.b16 %v134
    %v377 = vunpack.c.l.b16 %v135
    %v378 = vunpack.c.l.b16 %v136
    %v379 = vunpack.c.l.b16 %v137
    %v380 = vunpack.c.l.b16 %v138
    %v381 = vunpack.c.l.b16 %v139
    %v382 = vunpack.c.l.b16 %v140
    %v383 = vunpack.c.l.b16 %v141
    %v384 = vunpack.c.l.b16 %v142
    %v385 = vunpack.c.l.b16 %v143
    %v386 = vunpack.c.l.b16 %v144
    %v387 = vunpack.c.l.b16 %v145
    %v388 = vunpack.c.l.b16 %v146
    %v389 = vunpack.c.l.b16 %v147
    %v390 = vunpack.c.l.b16 %v148
    %v391 = vunpack.c.l.b16 %v149
    %v392 = vunpack.c.l.b16 %v150
    %v393 = vunpack.c.l.b16 %v151
    %v394 = vunpack.c.l.b16 %v152
    %v395 = vunpack.c.l.b16 %v153
    %v396 = vunpack.c.l.b16 %v154
    %v397 = vunpack.c.l.b16 %v155
    %v398 = vunpack.c.l.b16 %v156
    %v399 = vunpack.c.l.b16 %v157
    %v400 = vunpack.c.l.b16 %v158
    %v401 = vunpack.c.l.b16 %v159
    %v402 = vunpack.c.l.b16 %v160
    %v403 = vunpack.c.l.b16 %v161
    %v404 = vunpack.c.l.b16 %v162
    %v405 = vunpack.c.l.b16 %v163
    %v406 = vunpack.c.l.b16 %v164
    %v407 = vunpack.c.l.b16 %v165
    %v408 = vunpack.c.l.b16 %v166
    %v409 = vunpack.c.l.b16 %v167
    %v410 = vunpack.c.l.b16 %v168
    %v411 = vunpack.c.l.b16 %v169
    %v412 = vunpack.c.l.b16 %v170
    %v413 = vunpack.c.l.b16 %v171
    %v414 = vunpack.c.l.b16 %v172
    %v415 = vunpack.c.l.b16 %v173
    %v416 = vunpack.c.l.b16 %v174
    %v417 = vunpack.c.l.b16 %v175
    %v418 = vunpack.c.l.b16 %v176
    %v419 = vunpack.c.l.b16 %v177
    %v420 = vunpack.c.l.b16 %v178
    %v421 = vunpack.c.l.b16 %v179
    %v422 = vpack.c.b16 %v375, %v374
    %v423 = vpack.c.b16 %v377, %v376
    %v424 = vpack.c.b16 %v379, %v378
    %v425 = vpack.c.b16 %v381, %v380
    %v426 = vpack.c.b16 %v383, %v382
    %v427 = vpack.c.b16 %v385, %v384
    %v428 = vpack.c.b16 %v387, %v386
    %v429 = vpack.c.b16 %v389, %v388
    %v430 = vpack.c.b16 %v391, %v390
    %v431 = vpack.c.b16 %v393, %v392
    %v432 = vpack.c.b16 %v395, %v394
    %v433 = vpack.c.b16 %v397, %v396
    %v434 = vpack.c.b16 %v399, %v398
    %v435 = vpack.c.b16 %v401, %v400
    %v436 = vpack.c.b16 %v403, %v402
    %v437 = vpack.c.b16 %v405, %v404
    %v438 = vpack.c.b16 %v407, %v406
    %v439 = vpack.c.b16 %v409, %v408
    %v440 = vpack.c.b16 %v411, %v410
    %v441 = vpack.c.b16 %v413, %v412
    %v442 = vpack.c.b16 %v415, %v414
    %v443 = vpack.c.b16 %v417, %v416
    %v444 = vpack.c.b16 %v419, %v418
    %v445 = vpack.c.b16 %v421, %v420
    %470 = vmatprep.subr.bf16.mxu0 0
    %471 = vmatpush1.bf16.msra.mxu0 %v422
    %472 = vmatprep.subr.bf16.mxu0 0
    %473 = vmatpush1.bf16.msra.mxu0 %v423
    %474 = vmatprep.subr.bf16.mxu0 0
    %475 = vmatpush1.bf16.msra.mxu0 %v424
    %476 = vmatprep.subr.bf16.mxu0 0
    %477 = vmatpush1.bf16.msra.mxu0 %v425
    %478 = vmatprep.subr.bf16.mxu0 0
    %479 = vmatpush1.bf16.msra.mxu0 %v426
    %480 = vmatprep.subr.bf16.mxu0 0
    %481 = vmatpush1.bf16.msra.mxu0 %v427
    %482 = vmatprep.subr.bf16.mxu0 0
    %483 = vmatpush1.bf16.msra.mxu0 %v428
    %484 = vmatprep.subr.bf16.mxu0 0
    %485 = vmatpush1.bf16.msra.mxu0 %v429
    %486 = vmatprep.subr.bf16.mxu0 0
    %487 = vmatpush1.bf16.msra.mxu0 %v430
    %488 = vmatprep.subr.bf16.mxu0 0
    %489 = vmatpush1.bf16.msra.mxu0 %v431
    %490 = vmatprep.subr.bf16.mxu0 0
    %491 = vmatpush1.bf16.msra.mxu0 %v432
    %492 = vmatprep.subr.bf16.mxu0 0
    %493 = vmatpush1.bf16.msra.mxu0 %v433
    %494 = vmatprep.subr.bf16.mxu0 0
    %495 = vmatpush1.bf16.msra.mxu0 %v434
    %496 = vmatprep.subr.bf16.mxu0 0
    %497 = vmatpush1.bf16.msra.mxu0 %v435
    %498 = vmatprep.subr.bf16.mxu0 0
    %499 = vmatpush1.bf16.msra.mxu0 %v436
    %500 = vmatprep.subr.bf16.mxu0 0
    %501 = vmatpush1.bf16.msra.mxu0 %v437
    %502 = vmatprep.mubr.bf16.mxu0 %v303
    %503 = vmatmul.mubr.bf16.gmra.mrb[0].mxu0 %v302
    %v504 = vpop.f32.mrb[0].mxu0
    %v505 = vadd.f32 0.0, %v504
    %v506 = vpop.f32.mrb[0].mxu0
    %v507 = vpop.f32.mrb[0].mxu0
    %v508 = vadd.f32 0.0, %v507
    %v509 = vpop.f32.mrb[0].mxu0
    %510 = vmatprep.mubr.bf16.mxu0 %v306
    %511 = vmatmul.mubr.bf16.gmra.mrb[0].mxu0 %v305
    %v512 = vpop.f32.mrb[0].mxu0
    %v513 = vadd.f32 0.0, %v512
    %v514 = vpop.f32.mrb[0].mxu0
    %v515 = vpop.f32.mrb[0].mxu0
    %v516 = vadd.f32 0.0, %v515
    %v517 = vpop.f32.mrb[0].mxu0
    %518 = vmatprep.mubr.bf16.mxu0 %v309
    %519 = vmatmul.mubr.bf16.gmra.mrb[0].mxu0 %v308
    %v520 = vpop.f32.mrb[0].mxu0
    %v521 = vadd.f32 0.0, %v520
    %v522 = vpop.f32.mrb[0].mxu0
    %v523 = vpop.f32.mrb[0].mxu0
    %v524 = vadd.f32 0.0, %v523
    %v525 = vpop.f32.mrb[0].mxu0
    %526 = vmatprep.mubr.bf16.mxu0 %v312
    %527 = vmatmul.mubr.bf16.gmra.mrb[0].mxu0 %v311
    %v528 = vpop.f32.mrb[0].mxu0
    %v529 = vadd.f32 0.0, %v528
    %v530 = vpop.f32.mrb[0].mxu0
    %v531 = vpop.f32.mrb[0].mxu0
    %v532 = vadd.f32 0.0, %v531
    %v533 = vpop.f32.mrb[0].mxu0
    %534 = vmatprep.mubr.bf16.mxu0 %v315
    %535 = vmatmul.mubr.bf16.gmra.mrb[0].mxu0 %v314
    %v536 = vpop.f32.mrb[0].mxu0
    %v537 = vadd.f32 0.0, %v536
    %v538 = vpop.f32.mrb[0].mxu0
    %v539 = vpop.f32.mrb[0].mxu0
    %v540 = vadd.f32 0.0, %v539
    %v541 = vpop.f32.mrb[0].mxu0
    %542 = vmatprep.mubr.bf16.mxu0 %v318
    %543 = vmatmul.mubr.bf16.gmra.mrb[0].mxu0 %v317
    %v544 = vpop.f32.mrb[0].mxu0
    %v545 = vadd.f32 0.0, %v544
    %v546 = vpop.f32.mrb[0].mxu0
    %v547 = vpop.f32.mrb[0].mxu0
    %v548 = vadd.f32 0.0, %v547
    %v549 = vpop.f32.mrb[0].mxu0
    %550 = vmatprep.mubr.bf16.mxu0 %v321
    %551 = vmatmul.mubr.bf16.gmra.mrb[0].mxu0 %v320
    %v552 = vpop.f32.mrb[0].mxu0
    %v553 = vadd.f32 0.0, %v552
    %v554 = vpop.f32.mrb[0].mxu0
    %v555 = vpop.f32.mrb[0].mxu0
    %v556 = vadd.f32 0.0, %v555
    %v557 = vpop.f32.mrb[0].mxu0
    %558 = vmatprep.mubr.bf16.mxu0 %v324
    %559 = vmatmul.mubr.bf16.gmra.mrb[0].mxu0 %v323
    %v560 = vpop.f32.mrb[0].mxu0
    %v561 = vadd.f32 0.0, %v560
    %v562 = vpop.f32.mrb[0].mxu0
    %v563 = vpop.f32.mrb[0].mxu0
    %v564 = vadd.f32 0.0, %v563
    %v565 = vpop.f32.mrb[0].mxu0
    %566 = vdwg.mxu0
    %567 = vmatprep.subr.bf16.mxu0 0
    %568 = vmatpush1.bf16.msra.mxu0 %v438
    %569 = vmatprep.subr.bf16.mxu0 0
    %570 = vmatpush1.bf16.msra.mxu0 %v439
    %571 = vmatprep.subr.bf16.mxu0 0
    %572 = vmatpush1.bf16.msra.mxu0 %v440
    %573 = vmatprep.subr.bf16.mxu0 0
    %574 = vmatpush1.bf16.msra.mxu0 %v441
    %575 = vmatprep.subr.bf16.mxu0 0
    %576 = vmatpush1.bf16.msra.mxu0 %v442
    %577 = vmatprep.subr.bf16.mxu0 0
    %578 = vmatpush1.bf16.msra.mxu0 %v443
    %579 = vmatprep.subr.bf16.mxu0 0
    %580 = vmatpush1.bf16.msra.mxu0 %v444
    %581 = vmatprep.subr.bf16.mxu0 0
    %582 = vmatpush1.bf16.msra.mxu0 %v445
    %583 = vmatprep.subr.bf16.mxu0 0
    %584 = vmatpush1.bf16.msra.mxu0 0
    %585 = vmatprep.subr.bf16.mxu0 0
    %586 = vmatpush1.bf16.msra.mxu0 0
    %587 = vmatprep.subr.bf16.mxu0 0
    %588 = vmatpush1.bf16.msra.mxu0 0
    %589 = vmatprep.subr.bf16.mxu0 0
    %590 = vmatpush1.bf16.msra.mxu0 0
    %591 = vmatprep.subr.bf16.mxu0 0
    %592 = vmatpush1.bf16.msra.mxu0 0
    %593 = vmatprep.subr.bf16.mxu0 0
    %594 = vmatpush1.bf16.msra.mxu0 0
    %595 = vmatprep.subr.bf16.mxu0 0
    %596 = vmatpush1.bf16.msra.mxu0 0
    %597 = vmatprep.subr.bf16.mxu0 0
    %598 = vmatpush1.bf16.msra.mxu0 0
    %599 = vmatprep.mubr.bf16.mxu0 0
    %600 = vmatmul.mubr.bf16.gmra.mrb[0].mxu0 %v304
    %v601 = vpop.f32.mrb[0].mxu0
    %v602 = vadd.f32 %v505, %v601
    %v603 = vpop.f32.mrb[0].mxu0
    %v604 = vpop.f32.mrb[0].mxu0
    %v605 = vadd.f32 %v508, %v604
    %v606 = vpop.f32.mrb[0].mxu0
    %607 = vmatprep.mubr.bf16.mxu0 0
    %608 = vmatmul.mubr.bf16.gmra.mrb[0].mxu0 %v307
    %v609 = vpop.f32.mrb[0].mxu0
    %v610 = vadd.f32 %v513, %v609
    %v611 = vpop.f32.mrb[0].mxu0
    %v612 = vpop.f32.mrb[0].mxu0
    %v613 = vadd.f32 %v516, %v612
    %v614 = vpop.f32.mrb[0].mxu0
    %615 = vmatprep.mubr.bf16.mxu0 0
    %616 = vmatmul.mubr.bf16.gmra.mrb[0].mxu0 %v310
    %v617 = vpop.f32.mrb[0].mxu0
    %v618 = vadd.f32 %v521, %v617
    %v619 = vpop.f32.mrb[0].mxu0
    %v620 = vpop.f32.mrb[0].mxu0
    %v621 = vadd.f32 %v524, %v620
    %v622 = vpop.f32.mrb[0].mxu0
    %623 = vmatprep.mubr.bf16.mxu0 0
    %624 = vmatmul.mubr.bf16.gmra.mrb[0].mxu0 %v313
    %v625 = vpop.f32.mrb[0].mxu0
    %v626 = vadd.f32 %v529, %v625
    %v627 = vpop.f32.mrb[0].mxu0
    %v628 = vpop.f32.mrb[0].mxu0
    %v629 = vadd.f32 %v532, %v628
    %v630 = vpop.f32.mrb[0].mxu0
    %631 = vmatprep.mubr.bf16.mxu0 0
    %632 = vmatmul.mubr.bf16.gmra.mrb[0].mxu0 %v316
    %v633 = vpop.f32.mrb[0].mxu0
    %v634 = vadd.f32 %v537, %v633
    %v635 = vpop.f32.mrb[0].mxu0
    %v636 = vpop.f32.mrb[0].mxu0
    %v637 = vadd.f32 %v540, %v636
    %v638 = vpop.f32.mrb[0].mxu0
    %639 = vmatprep.mubr.bf16.mxu0 0
    %640 = vmatmul.mubr.bf16.gmra.mrb[0].mxu0 %v319
    %v641 = vpop.f32.mrb[0].mxu0
    %v642 = vadd.f32 %v545, %v641
    %v643 = vpop.f32.mrb[0].mxu0
    %v644 = vpop.f32.mrb[0].mxu0
    %v645 = vadd.f32 %v548, %v644
    %v646 = vpop.f32.mrb[0].mxu0
    %647 = vmatprep.mubr.bf16.mxu0 0
    %648 = vmatmul.mubr.bf16.gmra.mrb[0].mxu0 %v322
    %v649 = vpop.f32.mrb[0].mxu0
    %v650 = vadd.f32 %v553, %v649
    %v651 = vpop.f32.mrb[0].mxu0
    %v652 = vpop.f32.mrb[0].mxu0
    %v653 = vadd.f32 %v556, %v652
    %v654 = vpop.f32.mrb[0].mxu0
    %655 = vmatprep.mubr.bf16.mxu0 0
    %656 = vmatmul.mubr.bf16.gmra.mrb[0].mxu0 %v325
    %v657 = vpop.f32.mrb[0].mxu0
    %v658 = vadd.f32 %v561, %v657
    %v659 = vpop.f32.mrb[0].mxu0
    %v660 = vpop.f32.mrb[0].mxu0
    %v661 = vadd.f32 %v564, %v660
    %v662 = vpop.f32.mrb[0].mxu0
    %663 = vdwg.mxu0
    %664 = vmatprep.subr.bf16.mxu0 0
    %665 = vmatpush1.bf16.msra.mxu0 %v422
    %666 = vmatprep.subr.bf16.mxu0 0
    %667 = vmatpush1.bf16.msra.mxu0 %v423
    %668 = vmatprep.subr.bf16.mxu0 0
    %669 = vmatpush1.bf16.msra.mxu0 %v424
    %670 = vmatprep.subr.bf16.mxu0 0
    %671 = vmatpush1.bf16.msra.mxu0 %v425
    %672 = vmatprep.subr.bf16.mxu0 0
    %673 = vmatpush1.bf16.msra.mxu0 %v426
    %674 = vmatprep.subr.bf16.mxu0 0
    %675 = vmatpush1.bf16.msra.mxu0 %v427
    %676 = vmatprep.subr.bf16.mxu0 0
    %677 = vmatpush1.bf16.msra.mxu0 %v428
    %678 = vmatprep.subr.bf16.mxu0 0
    %679 = vmatpush1.bf16.msra.mxu0 %v429
    %680 = vmatprep.subr.bf16.mxu0 0
    %681 = vmatpush1.bf16.msra.mxu0 %v430
    %682 = vmatprep.subr.bf16.mxu0 0
    %683 = vmatpush1.bf16.msra.mxu0 %v431
    %684 = vmatprep.subr.bf16.mxu0 0
    %685 = vmatpush1.bf16.msra.mxu0 %v432
    %686 = vmatprep.subr.bf16.mxu0 0
    %687 = vmatpush1.bf16.msra.mxu0 %v433
    %688 = vmatprep.subr.bf16.mxu0 0
    %689 = vmatpush1.bf16.msra.mxu0 %v434
    %690 = vmatprep.subr.bf16.mxu0 0
    %691 = vmatpush1.bf16.msra.mxu0 %v435
    %692 = vmatprep.subr.bf16.mxu0 0
    %693 = vmatpush1.bf16.msra.mxu0 %v436
    %694 = vmatprep.subr.bf16.mxu0 0
    %695 = vmatpush1.bf16.msra.mxu0 %v437
    %696 = vmatprep.mubr.bf16.mxu0 %v183
    %697 = vmatmul.mubr.bf16.gmra.mrb[0].mxu0 %v182
    %v698 = vpop.f32.mrb[0].mxu0
    %v699 = vadd.f32 %v602, %v698
    %v700 = vpop.f32.mrb[0].mxu0
    %v701 = vpop.f32.mrb[0].mxu0
    %v702 = vadd.f32 %v605, %v701
    %v703 = vpop.f32.mrb[0].mxu0
    %704 = vmatprep.mubr.bf16.mxu0 %v186
    %705 = vmatmul.mubr.bf16.gmra.mrb[0].mxu0 %v185
    %v706 = vpop.f32.mrb[0].mxu0
    %v707 = vadd.f32 %v610, %v706
    %v708 = vpop.f32.mrb[0].mxu0
    %v709 = vpop.f32.mrb[0].mxu0
    %v710 = vadd.f32 %v613, %v709
    %v711 = vpop.f32.mrb[0].mxu0
    %712 = vmatprep.mubr.bf16.mxu0 %v189
    %713 = vmatmul.mubr.bf16.gmra.mrb[0].mxu0 %v188
    %v714 = vpop.f32.mrb[0].mxu0
    %v715 = vadd.f32 %v618, %v714
    %v716 = vpop.f32.mrb[0].mxu0
    %v717 = vpop.f32.mrb[0].mxu0
    %v718 = vadd.f32 %v621, %v717
    %v719 = vpop.f32.mrb[0].mxu0
    %720 = vmatprep.mubr.bf16.mxu0 %v192
    %721 = vmatmul.mubr.bf16.gmra.mrb[0].mxu0 %v191
    %v722 = vpop.f32.mrb[0].mxu0
    %v723 = vadd.f32 %v626, %v722
    %v724 = vpop.f32.mrb[0].mxu0
    %v725 = vpop.f32.mrb[0].mxu0
    %v726 = vadd.f32 %v629, %v725
    %v727 = vpop.f32.mrb[0].mxu0
    %728 = vmatprep.mubr.bf16.mxu0 %v195
    %729 = vmatmul.mubr.bf16.gmra.mrb[0].mxu0 %v194
    %v730 = vpop.f32.mrb[0].mxu0
    %v731 = vadd.f32 %v634, %v730
    %v732 = vpop.f32.mrb[0].mxu0
    %v733 = vpop.f32.mrb[0].mxu0
    %v734 = vadd.f32 %v637, %v733
    %v735 = vpop.f32.mrb[0].mxu0
    %736 = vmatprep.mubr.bf16.mxu0 %v198
    %737 = vmatmul.mubr.bf16.gmra.mrb[0].mxu0 %v197
    %v738 = vpop.f32.mrb[0].mxu0
    %v739 = vadd.f32 %v642, %v738
    %v740 = vpop.f32.mrb[0].mxu0
    %v741 = vpop.f32.mrb[0].mxu0
    %v742 = vadd.f32 %v645, %v741
    %v743 = vpop.f32.mrb[0].mxu0
    %744 = vmatprep.mubr.bf16.mxu0 %v201
    %745 = vmatmul.mubr.bf16.gmra.mrb[0].mxu0 %v200
    %v746 = vpop.f32.mrb[0].mxu0
    %v747 = vadd.f32 %v650, %v746
    %v748 = vpop.f32.mrb[0].mxu0
    %v749 = vpop.f32.mrb[0].mxu0
    %v750 = vadd.f32 %v653, %v749
    %v751 = vpop.f32.mrb[0].mxu0
    %752 = vmatprep.mubr.bf16.mxu0 %v204
    %753 = vmatmul.mubr.bf16.gmra.mrb[0].mxu0 %v203
    %v754 = vpop.f32.mrb[0].mxu0
    %v755 = vadd.f32 %v658, %v754
    %v756 = vpop.f32.mrb[0].mxu0
    %v757 = vpop.f32.mrb[0].mxu0
    %v758 = vadd.f32 %v661, %v757
    %v759 = vpop.f32.mrb[0].mxu0
    %760 = vdwg.mxu0
    %761 = vmatprep.subr.bf16.mxu0 0
    %762 = vmatpush1.bf16.msra.mxu0 %v438
    %763 = vmatprep.subr.bf16.mxu0 0
    %764 = vmatpush1.bf16.msra.mxu0 %v439
    %765 = vmatprep.subr.bf16.mxu0 0
    %766 = vmatpush1.bf16.msra.mxu0 %v440
    %767 = vmatprep.subr.bf16.mxu0 0
    %768 = vmatpush1.bf16.msra.mxu0 %v441
    %769 = vmatprep.subr.bf16.mxu0 0
    %770 = vmatpush1.bf16.msra.mxu0 %v442
    %771 = vmatprep.subr.bf16.mxu0 0
    %772 = vmatpush1.bf16.msra.mxu0 %v443
    %773 = vmatprep.subr.bf16.mxu0 0
    %774 = vmatpush1.bf16.msra.mxu0 %v444
    %775 = vmatprep.subr.bf16.mxu0 0
    %776 = vmatpush1.bf16.msra.mxu0 %v445
    %777 = vmatprep.subr.bf16.mxu0 0
    %778 = vmatpush1.bf16.msra.mxu0 0
    %779 = vmatprep.subr.bf16.mxu0 0
    %780 = vmatpush1.bf16.msra.mxu0 0
    %781 = vmatprep.subr.bf16.mxu0 0
    %782 = vmatpush1.bf16.msra.mxu0 0
    %783 = vmatprep.subr.bf16.mxu0 0
    %784 = vmatpush1.bf16.msra.mxu0 0
    %785 = vmatprep.subr.bf16.mxu0 0
    %786 = vmatpush1.bf16.msra.mxu0 0
    %787 = vmatprep.subr.bf16.mxu0 0
    %788 = vmatpush1.bf16.msra.mxu0 0
    %789 = vmatprep.subr.bf16.mxu0 0
    %790 = vmatpush1.bf16.msra.mxu0 0
    %791 = vmatprep.subr.bf16.mxu0 0
    %792 = vmatpush1.bf16.msra.mxu0 0
    %793 = vmatprep.mubr.bf16.mxu0 0
    %794 = vmatmul.mubr.bf16.gmra.mrb[0].mxu0 %v184
    %v795 = vpop.f32.mrb[0].mxu0
    %v796 = vadd.f32 %v699, %v795
    %v797 = vpop.f32.mrb[0].mxu0
    %v798 = vpop.f32.mrb[0].mxu0
    %v799 = vadd.f32 %v702, %v798
    %v800 = vpop.f32.mrb[0].mxu0
    %801 = vmatprep.mubr.bf16.mxu0 0
    %802 = vmatmul.mubr.bf16.gmra.mrb[0].mxu0 %v187
    %v803 = vpop.f32.mrb[0].mxu0
    %v804 = vadd.f32 %v707, %v803
    %v805 = vpop.f32.mrb[0].mxu0
    %v806 = vpop.f32.mrb[0].mxu0
    %v807 = vadd.f32 %v710, %v806
    %v808 = vpop.f32.mrb[0].mxu0
    %809 = vmatprep.mubr.bf16.mxu0 0
    %810 = vmatmul.mubr.bf16.gmra.mrb[0].mxu0 %v190
    %v811 = vpop.f32.mrb[0].mxu0
    %v812 = vadd.f32 %v715, %v811
    %v813 = vpop.f32.mrb[0].mxu0
    %v814 = vpop.f32.mrb[0].mxu0
    %v815 = vadd.f32 %v718, %v814
    %v816 = vpop.f32.mrb[0].mxu0
    %817 = vmatprep.mubr.bf16.mxu0 0
    %818 = vmatmul.mubr.bf16.gmra.mrb[0].mxu0 %v193
    %v819 = vpop.f32.mrb[0].mxu0
    %v820 = vadd.f32 %v723, %v819
    %v821 = vpop.f32.mrb[0].mxu0
    %v822 = vpop.f32.mrb[0].mxu0
    %v823 = vadd.f32 %v726, %v822
    %v824 = vpop.f32.mrb[0].mxu0
    %825 = vmatprep.mubr.bf16.mxu0 0
    %826 = vmatmul.mubr.bf16.gmra.mrb[0].mxu0 %v196
    %v827 = vpop.f32.mrb[0].mxu0
    %v828 = vadd.f32 %v731, %v827
    %v829 = vpop.f32.mrb[0].mxu0
    %v830 = vpop.f32.mrb[0].mxu0
    %v831 = vadd.f32 %v734, %v830
    %v832 = vpop.f32.mrb[0].mxu0
    %833 = vmatprep.mubr.bf16.mxu0 0
    %834 = vmatmul.mubr.bf16.gmra.mrb[0].mxu0 %v199
    %v835 = vpop.f32.mrb[0].mxu0
    %v836 = vadd.f32 %v739, %v835
    %v837 = vpop.f32.mrb[0].mxu0
    %v838 = vpop.f32.mrb[0].mxu0
    %v839 = vadd.f32 %v742, %v838
    %v840 = vpop.f32.mrb[0].mxu0
    %841 = vmatprep.mubr.bf16.mxu0 0
    %842 = vmatmul.mubr.bf16.gmra.mrb[0].mxu0 %v202
    %v843 = vpop.f32.mrb[0].mxu0
    %v844 = vadd.f32 %v747, %v843
    %v845 = vpop.f32.mrb[0].mxu0
    %v846 = vpop.f32.mrb[0].mxu0
    %v847 = vadd.f32 %v750, %v846
    %v848 = vpop.f32.mrb[0].mxu0
    %849 = vmatprep.mubr.bf16.mxu0 0
    %850 = vmatmul.mubr.bf16.gmra.mrb[0].mxu0 %v205
    %v851 = vpop.f32.mrb[0].mxu0
    %v852 = vadd.f32 %v755, %v851
    %v853 = vpop.f32.mrb[0].mxu0
    %v854 = vpop.f32.mrb[0].mxu0
    %v855 = vadd.f32 %v758, %v854
    %v856 = vpop.f32.mrb[0].mxu0
    %857 = vdwg.mxu0
    %v858 = vmul.f32 %v796, 0.020833334
    %v859 = vmul.f32 %v799, 0.020833334
    %v860 = vmul.f32 %v804, 0.020833334
    %v861 = vmul.f32 %v807, 0.020833334
    %v862 = vmul.f32 %v812, 0.020833334
    %v863 = vmul.f32 %v815, 0.020833334
    %v864 = vmul.f32 %v820, 0.020833334
    %v865 = vmul.f32 %v823, 0.020833334
    %v866 = vmul.f32 %v828, 0.020833334
    %v867 = vmul.f32 %v831, 0.020833334
    %v868 = vmul.f32 %v836, 0.020833334
    %v869 = vmul.f32 %v839, 0.020833334
    %v870 = vmul.f32 %v844, 0.020833334
    %v871 = vmul.f32 %v847, 0.020833334
    %v872 = vmul.f32 %v852, 0.020833334
    %v873 = vmul.f32 %v855, 0.020833334
    %v874 = vpack.c.bf16 %v859, %v858
    %v875 = vpack.c.bf16 %v861, %v860
    %v876 = vpack.c.bf16 %v863, %v862
    %v877 = vpack.c.bf16 %v865, %v864
    %v878 = vpack.c.bf16 %v867, %v866
    %v879 = vpack.c.bf16 %v869, %v868
    %v880 = vpack.c.bf16 %v871, %v870
    %v881 = vpack.c.bf16 %v873, %v872
    %v882 = vunpack.c.l.bf16 %v874
    %v883 = vunpack.c.h.bf16 %v874
    %v884 = vunpack.c.l.bf16 %v875
    %v885 = vunpack.c.h.bf16 %v875
    %v886 = vunpack.c.l.bf16 %v876
    %v887 = vunpack.c.h.bf16 %v876
    %v888 = vunpack.c.l.bf16 %v877
    %v889 = vunpack.c.h.bf16 %v877
    %v890 = vunpack.c.l.bf16 %v878
    %v891 = vunpack.c.h.bf16 %v878
    %v892 = vunpack.c.l.bf16 %v879
    %v893 = vunpack.c.h.bf16 %v879
    %v894 = vunpack.c.l.bf16 %v880
    %v895 = vunpack.c.h.bf16 %v880
    %v896 = vunpack.c.l.bf16 %v881
    %v897 = vunpack.c.h.bf16 %v881
    %v898 = vsub.f32 %v858, %v882
    %v899 = vsub.f32 %v859, %v883
    %v900 = vsub.f32 %v860, %v884
    %v901 = vsub.f32 %v861, %v885
    %v902 = vsub.f32 %v862, %v886
    %v903 = vsub.f32 %v863, %v887
    %v904 = vsub.f32 %v864, %v888
    %v905 = vsub.f32 %v865, %v889
    %v906 = vsub.f32 %v866, %v890
    %v907 = vsub.f32 %v867, %v891
    %v908 = vsub.f32 %v868, %v892
    %v909 = vsub.f32 %v869, %v893
    %v910 = vsub.f32 %v870, %v894
    %v911 = vsub.f32 %v871, %v895
    %v912 = vsub.f32 %v872, %v896
    %v913 = vsub.f32 %v873, %v897
    %v914 = vpack.c.bf16 %v899, %v898
    %v915 = vpack.c.bf16 %v901, %v900
    %v916 = vpack.c.bf16 %v903, %v902
    %v917 = vpack.c.bf16 %v905, %v904
    %v918 = vpack.c.bf16 %v907, %v906
    %v919 = vpack.c.bf16 %v909, %v908
    %v920 = vpack.c.bf16 %v911, %v910
    %v921 = vpack.c.bf16 %v913, %v912
    %v924 = vunpack.c.l.b16 %v180
    %v925 = vunpack.c.h.b16 %v180
    %v926 = vunpack.c.l.b16 %v181
    %v927 = vpack.c.b16 %v924, %v924
    %v928 = vpack.c.b16 %v925, %v925
    %v929 = vpack.c.b16 %v926, %v926
    %vm930 = vcmask 64512
    %v932 = vsel %vm930, %v914, 0
    %v935 = vsel %vm930, %v915, 0
    %v938 = vsel %vm930, %v916, 0
    %v941 = vsel %vm930, %v917, 0
    %v944 = vsel %vm930, %v918, 0
    %v947 = vsel %vm930, %v919, 0
    %v950 = vsel %vm930, %v920, 0
    %v953 = vsel %vm930, %v921, 0
    %vm955 = vcmask 1043456
    %v957 = vsel %vm955, %v927, 0
    %v960 = vsel %vm955, %v928, 0
    %v963 = vsel %vm955, %v929, 0
    %965 = vmatprep.subr.bf16.mxu0 %v960
    %966 = vmatpush1.bf16.msra.mxu0 %v957
    %967 = vmatprep.subr.bf16.mxu0 0
    %968 = vmatpush1.bf16.msra.mxu0 0
    %969 = vmatprep.subr.bf16.mxu0 0
    %970 = vmatpush1.bf16.msra.mxu0 0
    %971 = vmatprep.subr.bf16.mxu0 0
    %972 = vmatpush1.bf16.msra.mxu0 0
    %973 = vmatprep.subr.bf16.mxu0 0
    %974 = vmatpush1.bf16.msra.mxu0 0
    %975 = vmatprep.subr.bf16.mxu0 0
    %976 = vmatpush1.bf16.msra.mxu0 0
    %977 = vmatprep.subr.bf16.mxu0 0
    %978 = vmatpush1.bf16.msra.mxu0 0
    %979 = vmatprep.subr.bf16.mxu0 0
    %980 = vmatpush1.bf16.msra.mxu0 0
    %981 = vmatprep.subr.bf16.mxu0 0
    %982 = vmatpush1.bf16.msra.mxu0 0
    %983 = vmatprep.subr.bf16.mxu0 0
    %984 = vmatpush1.bf16.msra.mxu0 0
    %985 = vmatprep.subr.bf16.mxu0 0
    %986 = vmatpush1.bf16.msra.mxu0 0
    %987 = vmatprep.subr.bf16.mxu0 0
    %988 = vmatpush1.bf16.msra.mxu0 0
    %989 = vmatprep.subr.bf16.mxu0 0
    %990 = vmatpush1.bf16.msra.mxu0 0
    %991 = vmatprep.subr.bf16.mxu0 0
    %992 = vmatpush1.bf16.msra.mxu0 0
    %993 = vmatprep.subr.bf16.mxu0 0
    %994 = vmatpush1.bf16.msra.mxu0 0
    %995 = vmatprep.subr.bf16.mxu0 0
    %996 = vmatpush1.bf16.msra.mxu0 0
    %997 = vmatprep.mubr.bf16.mxu0 0
    %998 = vmatmul.mubr.bf16.gmra.mrb[0].mxu0 %v932
    %v999 = vpop.f32.mrb[0].mxu0
    %v1000 = vadd.f32 0.0, %v999
    %v1001 = vpop.f32.mrb[0].mxu0
    %v1002 = vadd.f32 0.0, %v1001
    %v1003 = vpop.f32.mrb[0].mxu0
    %v1004 = vadd.f32 0.0, %v1003
    %v1005 = vpop.f32.mrb[0].mxu0
    %v1006 = vadd.f32 0.0, %v1005
    %1007 = vmatprep.mubr.bf16.mxu0 0
    %1008 = vmatmul.mubr.bf16.gmra.mrb[0].mxu0 %v935
    %v1009 = vpop.f32.mrb[0].mxu0
    %v1010 = vadd.f32 0.0, %v1009
    %v1011 = vpop.f32.mrb[0].mxu0
    %v1012 = vadd.f32 0.0, %v1011
    %v1013 = vpop.f32.mrb[0].mxu0
    %v1014 = vadd.f32 0.0, %v1013
    %v1015 = vpop.f32.mrb[0].mxu0
    %v1016 = vadd.f32 0.0, %v1015
    %1017 = vmatprep.mubr.bf16.mxu0 0
    %1018 = vmatmul.mubr.bf16.gmra.mrb[0].mxu0 %v938
    %v1019 = vpop.f32.mrb[0].mxu0
    %v1020 = vadd.f32 0.0, %v1019
    %v1021 = vpop.f32.mrb[0].mxu0
    %v1022 = vadd.f32 0.0, %v1021
    %v1023 = vpop.f32.mrb[0].mxu0
    %v1024 = vadd.f32 0.0, %v1023
    %v1025 = vpop.f32.mrb[0].mxu0
    %v1026 = vadd.f32 0.0, %v1025
    %1027 = vmatprep.mubr.bf16.mxu0 0
    %1028 = vmatmul.mubr.bf16.gmra.mrb[0].mxu0 %v941
    %v1029 = vpop.f32.mrb[0].mxu0
    %v1030 = vadd.f32 0.0, %v1029
    %v1031 = vpop.f32.mrb[0].mxu0
    %v1032 = vadd.f32 0.0, %v1031
    %v1033 = vpop.f32.mrb[0].mxu0
    %v1034 = vadd.f32 0.0, %v1033
    %v1035 = vpop.f32.mrb[0].mxu0
    %v1036 = vadd.f32 0.0, %v1035
    %1037 = vmatprep.mubr.bf16.mxu0 0
    %1038 = vmatmul.mubr.bf16.gmra.mrb[0].mxu0 %v944
    %v1039 = vpop.f32.mrb[0].mxu0
    %v1040 = vadd.f32 0.0, %v1039
    %v1041 = vpop.f32.mrb[0].mxu0
    %v1042 = vadd.f32 0.0, %v1041
    %v1043 = vpop.f32.mrb[0].mxu0
    %v1044 = vadd.f32 0.0, %v1043
    %v1045 = vpop.f32.mrb[0].mxu0
    %v1046 = vadd.f32 0.0, %v1045
    %1047 = vmatprep.mubr.bf16.mxu0 0
    %1048 = vmatmul.mubr.bf16.gmra.mrb[0].mxu0 %v947
    %v1049 = vpop.f32.mrb[0].mxu0
    %v1050 = vadd.f32 0.0, %v1049
    %v1051 = vpop.f32.mrb[0].mxu0
    %v1052 = vadd.f32 0.0, %v1051
    %v1053 = vpop.f32.mrb[0].mxu0
    %v1054 = vadd.f32 0.0, %v1053
    %v1055 = vpop.f32.mrb[0].mxu0
    %v1056 = vadd.f32 0.0, %v1055
    %1057 = vmatprep.mubr.bf16.mxu0 0
    %1058 = vmatmul.mubr.bf16.gmra.mrb[0].mxu0 %v950
    %v1059 = vpop.f32.mrb[0].mxu0
    %v1060 = vadd.f32 0.0, %v1059
    %v1061 = vpop.f32.mrb[0].mxu0
    %v1062 = vadd.f32 0.0, %v1061
    %v1063 = vpop.f32.mrb[0].mxu0
    %v1064 = vadd.f32 0.0, %v1063
    %v1065 = vpop.f32.mrb[0].mxu0
    %v1066 = vadd.f32 0.0, %v1065
    %1067 = vmatprep.mubr.bf16.mxu0 0
    %1068 = vmatmul.mubr.bf16.gmra.mrb[0].mxu0 %v953
    %v1069 = vpop.f32.mrb[0].mxu0
    %v1070 = vadd.f32 0.0, %v1069
    %v1071 = vpop.f32.mrb[0].mxu0
    %v1072 = vadd.f32 0.0, %v1071
    %v1073 = vpop.f32.mrb[0].mxu0
    %v1074 = vadd.f32 0.0, %v1073
    %v1075 = vpop.f32.mrb[0].mxu0
    %v1076 = vadd.f32 0.0, %v1075
    %1077 = vdwg.mxu0
    %1078 = vmatprep.subr.bf16.mxu0 0
    %1079 = vmatpush1.bf16.msra.mxu0 %v963
    %1080 = vmatprep.subr.bf16.mxu0 0
    %1081 = vmatpush1.bf16.msra.mxu0 0
    %1082 = vmatprep.subr.bf16.mxu0 0
    %1083 = vmatpush1.bf16.msra.mxu0 0
    %1084 = vmatprep.subr.bf16.mxu0 0
    %1085 = vmatpush1.bf16.msra.mxu0 0
    %1086 = vmatprep.subr.bf16.mxu0 0
    %1087 = vmatpush1.bf16.msra.mxu0 0
    %1088 = vmatprep.subr.bf16.mxu0 0
    %1089 = vmatpush1.bf16.msra.mxu0 0
    %1090 = vmatprep.subr.bf16.mxu0 0
    %1091 = vmatpush1.bf16.msra.mxu0 0
    %1092 = vmatprep.subr.bf16.mxu0 0
    %1093 = vmatpush1.bf16.msra.mxu0 0
    %1094 = vmatprep.subr.bf16.mxu0 0
    %1095 = vmatpush1.bf16.msra.mxu0 0
    %1096 = vmatprep.subr.bf16.mxu0 0
    %1097 = vmatpush1.bf16.msra.mxu0 0
    %1098 = vmatprep.subr.bf16.mxu0 0
    %1099 = vmatpush1.bf16.msra.mxu0 0
    %1100 = vmatprep.subr.bf16.mxu0 0
    %1101 = vmatpush1.bf16.msra.mxu0 0
    %1102 = vmatprep.subr.bf16.mxu0 0
    %1103 = vmatpush1.bf16.msra.mxu0 0
    %1104 = vmatprep.subr.bf16.mxu0 0
    %1105 = vmatpush1.bf16.msra.mxu0 0
    %1106 = vmatprep.subr.bf16.mxu0 0
    %1107 = vmatpush1.bf16.msra.mxu0 0
    %1108 = vmatprep.subr.bf16.mxu0 0
    %1109 = vmatpush1.bf16.msra.mxu0 0
    %1110 = vmatprep.mubr.bf16.mxu0 0
    %1111 = vmatmul.mubr.bf16.gmra.mrb[0].mxu0 %v932
    %v1112 = vpop.f32.mrb[0].mxu0
    %v1113 = vadd.f32 0.0, %v1112
    %v1114 = vpop.f32.mrb[0].mxu0
    %v1115 = vpop.f32.mrb[0].mxu0
    %v1116 = vadd.f32 0.0, %v1115
    %v1117 = vpop.f32.mrb[0].mxu0
    %1118 = vmatprep.mubr.bf16.mxu0 0
    %1119 = vmatmul.mubr.bf16.gmra.mrb[0].mxu0 %v935
    %v1120 = vpop.f32.mrb[0].mxu0
    %v1121 = vadd.f32 0.0, %v1120
    %v1122 = vpop.f32.mrb[0].mxu0
    %v1123 = vpop.f32.mrb[0].mxu0
    %v1124 = vadd.f32 0.0, %v1123
    %v1125 = vpop.f32.mrb[0].mxu0
    %1126 = vmatprep.mubr.bf16.mxu0 0
    %1127 = vmatmul.mubr.bf16.gmra.mrb[0].mxu0 %v938
    %v1128 = vpop.f32.mrb[0].mxu0
    %v1129 = vadd.f32 0.0, %v1128
    %v1130 = vpop.f32.mrb[0].mxu0
    %v1131 = vpop.f32.mrb[0].mxu0
    %v1132 = vadd.f32 0.0, %v1131
    %v1133 = vpop.f32.mrb[0].mxu0
    %1134 = vmatprep.mubr.bf16.mxu0 0
    %1135 = vmatmul.mubr.bf16.gmra.mrb[0].mxu0 %v941
    %v1136 = vpop.f32.mrb[0].mxu0
    %v1137 = vadd.f32 0.0, %v1136
    %v1138 = vpop.f32.mrb[0].mxu0
    %v1139 = vpop.f32.mrb[0].mxu0
    %v1140 = vadd.f32 0.0, %v1139
    %v1141 = vpop.f32.mrb[0].mxu0
    %1142 = vmatprep.mubr.bf16.mxu0 0
    %1143 = vmatmul.mubr.bf16.gmra.mrb[0].mxu0 %v944
    %v1144 = vpop.f32.mrb[0].mxu0
    %v1145 = vadd.f32 0.0, %v1144
    %v1146 = vpop.f32.mrb[0].mxu0
    %v1147 = vpop.f32.mrb[0].mxu0
    %v1148 = vadd.f32 0.0, %v1147
    %v1149 = vpop.f32.mrb[0].mxu0
    %1150 = vmatprep.mubr.bf16.mxu0 0
    %1151 = vmatmul.mubr.bf16.gmra.mrb[0].mxu0 %v947
    %v1152 = vpop.f32.mrb[0].mxu0
    %v1153 = vadd.f32 0.0, %v1152
    %v1154 = vpop.f32.mrb[0].mxu0
    %v1155 = vpop.f32.mrb[0].mxu0
    %v1156 = vadd.f32 0.0, %v1155
    %v1157 = vpop.f32.mrb[0].mxu0
    %1158 = vmatprep.mubr.bf16.mxu0 0
    %1159 = vmatmul.mubr.bf16.gmra.mrb[0].mxu0 %v950
    %v1160 = vpop.f32.mrb[0].mxu0
    %v1161 = vadd.f32 0.0, %v1160
    %v1162 = vpop.f32.mrb[0].mxu0
    %v1163 = vpop.f32.mrb[0].mxu0
    %v1164 = vadd.f32 0.0, %v1163
    %v1165 = vpop.f32.mrb[0].mxu0
    %1166 = vmatprep.mubr.bf16.mxu0 0
    %1167 = vmatmul.mubr.bf16.gmra.mrb[0].mxu0 %v953
    %v1168 = vpop.f32.mrb[0].mxu0
    %v1169 = vadd.f32 0.0, %v1168
    %v1170 = vpop.f32.mrb[0].mxu0
    %v1171 = vpop.f32.mrb[0].mxu0
    %v1172 = vadd.f32 0.0, %v1171
    %v1173 = vpop.f32.mrb[0].mxu0
    %1174 = vdwg.mxu0
    %v1176 = vsel %vm930, %v874, 0
    %v1179 = vsel %vm930, %v875, 0
    %v1182 = vsel %vm930, %v876, 0
    %v1185 = vsel %vm930, %v877, 0
    %v1188 = vsel %vm930, %v878, 0
    %v1191 = vsel %vm930, %v879, 0
    %v1194 = vsel %vm930, %v880, 0
    %v1197 = vsel %vm930, %v881, 0
    %1199 = vmatprep.subr.bf16.mxu0 %v960
    %1200 = vmatpush1.bf16.msra.mxu0 %v957
    %1201 = vmatprep.subr.bf16.mxu0 0
    %1202 = vmatpush1.bf16.msra.mxu0 0
    %1203 = vmatprep.subr.bf16.mxu0 0
    %1204 = vmatpush1.bf16.msra.mxu0 0
    %1205 = vmatprep.subr.bf16.mxu0 0
    %1206 = vmatpush1.bf16.msra.mxu0 0
    %1207 = vmatprep.subr.bf16.mxu0 0
    %1208 = vmatpush1.bf16.msra.mxu0 0
    %1209 = vmatprep.subr.bf16.mxu0 0
    %1210 = vmatpush1.bf16.msra.mxu0 0
    %1211 = vmatprep.subr.bf16.mxu0 0
    %1212 = vmatpush1.bf16.msra.mxu0 0
    %1213 = vmatprep.subr.bf16.mxu0 0
    %1214 = vmatpush1.bf16.msra.mxu0 0
    %1215 = vmatprep.subr.bf16.mxu0 0
    %1216 = vmatpush1.bf16.msra.mxu0 0
    %1217 = vmatprep.subr.bf16.mxu0 0
    %1218 = vmatpush1.bf16.msra.mxu0 0
    %1219 = vmatprep.subr.bf16.mxu0 0
    %1220 = vmatpush1.bf16.msra.mxu0 0
    %1221 = vmatprep.subr.bf16.mxu0 0
    %1222 = vmatpush1.bf16.msra.mxu0 0
    %1223 = vmatprep.subr.bf16.mxu0 0
    %1224 = vmatpush1.bf16.msra.mxu0 0
    %1225 = vmatprep.subr.bf16.mxu0 0
    %1226 = vmatpush1.bf16.msra.mxu0 0
    %1227 = vmatprep.subr.bf16.mxu0 0
    %1228 = vmatpush1.bf16.msra.mxu0 0
    %1229 = vmatprep.subr.bf16.mxu0 0
    %1230 = vmatpush1.bf16.msra.mxu0 0
    %1231 = vmatprep.mubr.bf16.mxu0 0
    %1232 = vmatmul.mubr.bf16.gmra.mrb[0].mxu0 %v1176
    %v1233 = vpop.f32.mrb[0].mxu0
    %v1234 = vadd.f32 %v1000, %v1233
    %v1235 = vpop.f32.mrb[0].mxu0
    %v1236 = vadd.f32 %v1002, %v1235
    %v1237 = vpop.f32.mrb[0].mxu0
    %v1238 = vadd.f32 %v1004, %v1237
    %v1239 = vpop.f32.mrb[0].mxu0
    %v1240 = vadd.f32 %v1006, %v1239
    %1241 = vmatprep.mubr.bf16.mxu0 0
    %1242 = vmatmul.mubr.bf16.gmra.mrb[0].mxu0 %v1179
    %v1243 = vpop.f32.mrb[0].mxu0
    %v1244 = vadd.f32 %v1010, %v1243
    %v1245 = vpop.f32.mrb[0].mxu0
    %v1246 = vadd.f32 %v1012, %v1245
    %v1247 = vpop.f32.mrb[0].mxu0
    %v1248 = vadd.f32 %v1014, %v1247
    %v1249 = vpop.f32.mrb[0].mxu0
    %v1250 = vadd.f32 %v1016, %v1249
    %1251 = vmatprep.mubr.bf16.mxu0 0
    %1252 = vmatmul.mubr.bf16.gmra.mrb[0].mxu0 %v1182
    %v1253 = vpop.f32.mrb[0].mxu0
    %v1254 = vadd.f32 %v1020, %v1253
    %v1255 = vpop.f32.mrb[0].mxu0
    %v1256 = vadd.f32 %v1022, %v1255
    %v1257 = vpop.f32.mrb[0].mxu0
    %v1258 = vadd.f32 %v1024, %v1257
    %v1259 = vpop.f32.mrb[0].mxu0
    %v1260 = vadd.f32 %v1026, %v1259
    %1261 = vmatprep.mubr.bf16.mxu0 0
    %1262 = vmatmul.mubr.bf16.gmra.mrb[0].mxu0 %v1185
    %v1263 = vpop.f32.mrb[0].mxu0
    %v1264 = vadd.f32 %v1030, %v1263
    %v1265 = vpop.f32.mrb[0].mxu0
    %v1266 = vadd.f32 %v1032, %v1265
    %v1267 = vpop.f32.mrb[0].mxu0
    %v1268 = vadd.f32 %v1034, %v1267
    %v1269 = vpop.f32.mrb[0].mxu0
    %v1270 = vadd.f32 %v1036, %v1269
    %1271 = vmatprep.mubr.bf16.mxu0 0
    %1272 = vmatmul.mubr.bf16.gmra.mrb[0].mxu0 %v1188
    %v1273 = vpop.f32.mrb[0].mxu0
    %v1274 = vadd.f32 %v1040, %v1273
    %v1275 = vpop.f32.mrb[0].mxu0
    %v1276 = vadd.f32 %v1042, %v1275
    %v1277 = vpop.f32.mrb[0].mxu0
    %v1278 = vadd.f32 %v1044, %v1277
    %v1279 = vpop.f32.mrb[0].mxu0
    %v1280 = vadd.f32 %v1046, %v1279
    %1281 = vmatprep.mubr.bf16.mxu0 0
    %1282 = vmatmul.mubr.bf16.gmra.mrb[0].mxu0 %v1191
    %v1283 = vpop.f32.mrb[0].mxu0
    %v1284 = vadd.f32 %v1050, %v1283
    %v1285 = vpop.f32.mrb[0].mxu0
    %v1286 = vadd.f32 %v1052, %v1285
    %v1287 = vpop.f32.mrb[0].mxu0
    %v1288 = vadd.f32 %v1054, %v1287
    %v1289 = vpop.f32.mrb[0].mxu0
    %v1290 = vadd.f32 %v1056, %v1289
    %1291 = vmatprep.mubr.bf16.mxu0 0
    %1292 = vmatmul.mubr.bf16.gmra.mrb[0].mxu0 %v1194
    %v1293 = vpop.f32.mrb[0].mxu0
    %v1294 = vadd.f32 %v1060, %v1293
    %v1295 = vpop.f32.mrb[0].mxu0
    %v1296 = vadd.f32 %v1062, %v1295
    %v1297 = vpop.f32.mrb[0].mxu0
    %v1298 = vadd.f32 %v1064, %v1297
    %v1299 = vpop.f32.mrb[0].mxu0
    %v1300 = vadd.f32 %v1066, %v1299
    %1301 = vmatprep.mubr.bf16.mxu0 0
    %1302 = vmatmul.mubr.bf16.gmra.mrb[0].mxu0 %v1197
    %v1303 = vpop.f32.mrb[0].mxu0
    %v1304 = vadd.f32 %v1070, %v1303
    %v1305 = vpop.f32.mrb[0].mxu0
    %v1306 = vadd.f32 %v1072, %v1305
    %v1307 = vpop.f32.mrb[0].mxu0
    %v1308 = vadd.f32 %v1074, %v1307
    %v1309 = vpop.f32.mrb[0].mxu0
    %v1310 = vadd.f32 %v1076, %v1309
    %1311 = vdwg.mxu0
    %1312 = vmatprep.subr.bf16.mxu0 0
    %1313 = vmatpush1.bf16.msra.mxu0 %v963
    %1314 = vmatprep.subr.bf16.mxu0 0
    %1315 = vmatpush1.bf16.msra.mxu0 0
    %1316 = vmatprep.subr.bf16.mxu0 0
    %1317 = vmatpush1.bf16.msra.mxu0 0
    %1318 = vmatprep.subr.bf16.mxu0 0
    %1319 = vmatpush1.bf16.msra.mxu0 0
    %1320 = vmatprep.subr.bf16.mxu0 0
    %1321 = vmatpush1.bf16.msra.mxu0 0
    %1322 = vmatprep.subr.bf16.mxu0 0
    %1323 = vmatpush1.bf16.msra.mxu0 0
    %1324 = vmatprep.subr.bf16.mxu0 0
    %1325 = vmatpush1.bf16.msra.mxu0 0
    %1326 = vmatprep.subr.bf16.mxu0 0
    %1327 = vmatpush1.bf16.msra.mxu0 0
    %1328 = vmatprep.subr.bf16.mxu0 0
    %1329 = vmatpush1.bf16.msra.mxu0 0
    %1330 = vmatprep.subr.bf16.mxu0 0
    %1331 = vmatpush1.bf16.msra.mxu0 0
    %1332 = vmatprep.subr.bf16.mxu0 0
    %1333 = vmatpush1.bf16.msra.mxu0 0
    %1334 = vmatprep.subr.bf16.mxu0 0
    %1335 = vmatpush1.bf16.msra.mxu0 0
    %1336 = vmatprep.subr.bf16.mxu0 0
    %1337 = vmatpush1.bf16.msra.mxu0 0
    %1338 = vmatprep.subr.bf16.mxu0 0
    %1339 = vmatpush1.bf16.msra.mxu0 0
    %1340 = vmatprep.subr.bf16.mxu0 0
    %1341 = vmatpush1.bf16.msra.mxu0 0
    %1342 = vmatprep.subr.bf16.mxu0 0
    %1343 = vmatpush1.bf16.msra.mxu0 0
    %1344 = vmatprep.mubr.bf16.mxu0 0
    %1345 = vmatmul.mubr.bf16.gmra.mrb[0].mxu0 %v1176
    %v1346 = vpop.f32.mrb[0].mxu0
    %v1347 = vadd.f32 %v1113, %v1346
    %v1348 = vpop.f32.mrb[0].mxu0
    %v1349 = vpop.f32.mrb[0].mxu0
    %v1350 = vadd.f32 %v1116, %v1349
    %v1351 = vpop.f32.mrb[0].mxu0
    %1352 = vmatprep.mubr.bf16.mxu0 0
    %1353 = vmatmul.mubr.bf16.gmra.mrb[0].mxu0 %v1179
    %v1354 = vpop.f32.mrb[0].mxu0
    %v1355 = vadd.f32 %v1121, %v1354
    %v1356 = vpop.f32.mrb[0].mxu0
    %v1357 = vpop.f32.mrb[0].mxu0
    %v1358 = vadd.f32 %v1124, %v1357
    %v1359 = vpop.f32.mrb[0].mxu0
    %1360 = vmatprep.mubr.bf16.mxu0 0
    %1361 = vmatmul.mubr.bf16.gmra.mrb[0].mxu0 %v1182
    %v1362 = vpop.f32.mrb[0].mxu0
    %v1363 = vadd.f32 %v1129, %v1362
    %v1364 = vpop.f32.mrb[0].mxu0
    %v1365 = vpop.f32.mrb[0].mxu0
    %v1366 = vadd.f32 %v1132, %v1365
    %v1367 = vpop.f32.mrb[0].mxu0
    %1368 = vmatprep.mubr.bf16.mxu0 0
    %1369 = vmatmul.mubr.bf16.gmra.mrb[0].mxu0 %v1185
    %v1370 = vpop.f32.mrb[0].mxu0
    %v1371 = vadd.f32 %v1137, %v1370
    %v1372 = vpop.f32.mrb[0].mxu0
    %v1373 = vpop.f32.mrb[0].mxu0
    %v1374 = vadd.f32 %v1140, %v1373
    %v1375 = vpop.f32.mrb[0].mxu0
    %1376 = vmatprep.mubr.bf16.mxu0 0
    %1377 = vmatmul.mubr.bf16.gmra.mrb[0].mxu0 %v1188
    %v1378 = vpop.f32.mrb[0].mxu0
    %v1379 = vadd.f32 %v1145, %v1378
    %v1380 = vpop.f32.mrb[0].mxu0
    %v1381 = vpop.f32.mrb[0].mxu0
    %v1382 = vadd.f32 %v1148, %v1381
    %v1383 = vpop.f32.mrb[0].mxu0
    %1384 = vmatprep.mubr.bf16.mxu0 0
    %1385 = vmatmul.mubr.bf16.gmra.mrb[0].mxu0 %v1191
    %v1386 = vpop.f32.mrb[0].mxu0
    %v1387 = vadd.f32 %v1153, %v1386
    %v1388 = vpop.f32.mrb[0].mxu0
    %v1389 = vpop.f32.mrb[0].mxu0
    %v1390 = vadd.f32 %v1156, %v1389
    %v1391 = vpop.f32.mrb[0].mxu0
    %1392 = vmatprep.mubr.bf16.mxu0 0
    %1393 = vmatmul.mubr.bf16.gmra.mrb[0].mxu0 %v1194
    %v1394 = vpop.f32.mrb[0].mxu0
    %v1395 = vadd.f32 %v1161, %v1394
    %v1396 = vpop.f32.mrb[0].mxu0
    %v1397 = vpop.f32.mrb[0].mxu0
    %v1398 = vadd.f32 %v1164, %v1397
    %v1399 = vpop.f32.mrb[0].mxu0
    %1400 = vmatprep.mubr.bf16.mxu0 0
    %1401 = vmatmul.mubr.bf16.gmra.mrb[0].mxu0 %v1197
    %v1402 = vpop.f32.mrb[0].mxu0
    %v1403 = vadd.f32 %v1169, %v1402
    %v1404 = vpop.f32.mrb[0].mxu0
    %v1405 = vpop.f32.mrb[0].mxu0
    %v1406 = vadd.f32 %v1172, %v1405
    %v1407 = vpop.f32.mrb[0].mxu0
    %1408 = vdwg.mxu0
    %v1409 = vsub.f32 %v84, %v1234
    %v1410 = vsub.f32 %v85, %v1236
    %v1411 = vsub.f32 %v86, %v1347
    %v1412 = vsub.f32 %v87, %v1238
    %v1413 = vsub.f32 %v88, %v1240
    %v1414 = vsub.f32 %v89, %v1350
    %v1415 = vsub.f32 %v90, %v1244
    %v1416 = vsub.f32 %v91, %v1246
    %v1417 = vsub.f32 %v92, %v1355
    %v1418 = vsub.f32 %v93, %v1248
    %v1419 = vsub.f32 %v94, %v1250
    %v1420 = vsub.f32 %v95, %v1358
    %v1421 = vsub.f32 %v96, %v1254
    %v1422 = vsub.f32 %v97, %v1256
    %v1423 = vsub.f32 %v98, %v1363
    %v1424 = vsub.f32 %v99, %v1258
    %v1425 = vsub.f32 %v100, %v1260
    %v1426 = vsub.f32 %v101, %v1366
    %v1427 = vsub.f32 %v102, %v1264
    %v1428 = vsub.f32 %v103, %v1266
    %v1429 = vsub.f32 %v104, %v1371
    %v1430 = vsub.f32 %v105, %v1268
    %v1431 = vsub.f32 %v106, %v1270
    %v1432 = vsub.f32 %v107, %v1374
    %v1433 = vsub.f32 %v108, %v1274
    %v1434 = vsub.f32 %v109, %v1276
    %v1435 = vsub.f32 %v110, %v1379
    %v1436 = vsub.f32 %v111, %v1278
    %v1437 = vsub.f32 %v112, %v1280
    %v1438 = vsub.f32 %v113, %v1382
    %v1439 = vsub.f32 %v114, %v1284
    %v1440 = vsub.f32 %v115, %v1286
    %v1441 = vsub.f32 %v116, %v1387
    %v1442 = vsub.f32 %v117, %v1288
    %v1443 = vsub.f32 %v118, %v1290
    %v1444 = vsub.f32 %v119, %v1390
    %v1445 = vsub.f32 %v120, %v1294
    %v1446 = vsub.f32 %v121, %v1296
    %v1447 = vsub.f32 %v122, %v1395
    %v1448 = vsub.f32 %v123, %v1298
    %v1449 = vsub.f32 %v124, %v1300
    %v1450 = vsub.f32 %v125, %v1398
    %v1451 = vsub.f32 %v126, %v1304
    %v1452 = vsub.f32 %v127, %v1306
    %v1453 = vsub.f32 %v128, %v1403
    %v1454 = vsub.f32 %v129, %v1308
    %v1455 = vsub.f32 %v130, %v1310
    %v1456 = vsub.f32 %v131, %v1406
    %v1457 = vmul.f32 %v1409, %v1409
    %v1458 = vmul.f32 %v1410, %v1410
    %v1459 = vmul.f32 %v1411, %v1411
    %v1460 = vmul.f32 %v1412, %v1412
    %v1461 = vmul.f32 %v1413, %v1413
    %v1462 = vmul.f32 %v1414, %v1414
    %v1463 = vmul.f32 %v1415, %v1415
    %v1464 = vmul.f32 %v1416, %v1416
    %v1465 = vmul.f32 %v1417, %v1417
    %v1466 = vmul.f32 %v1418, %v1418
    %v1467 = vmul.f32 %v1419, %v1419
    %v1468 = vmul.f32 %v1420, %v1420
    %v1469 = vmul.f32 %v1421, %v1421
    %v1470 = vmul.f32 %v1422, %v1422
    %v1471 = vmul.f32 %v1423, %v1423
    %v1472 = vmul.f32 %v1424, %v1424
    %v1473 = vmul.f32 %v1425, %v1425
    %v1474 = vmul.f32 %v1426, %v1426
    %v1475 = vmul.f32 %v1427, %v1427
    %v1476 = vmul.f32 %v1428, %v1428
    %v1477 = vmul.f32 %v1429, %v1429
    %v1478 = vmul.f32 %v1430, %v1430
    %v1479 = vmul.f32 %v1431, %v1431
    %v1480 = vmul.f32 %v1432, %v1432
    %v1481 = vmul.f32 %v1433, %v1433
    %v1482 = vmul.f32 %v1434, %v1434
    %v1483 = vmul.f32 %v1435, %v1435
    %v1484 = vmul.f32 %v1436, %v1436
    %v1485 = vmul.f32 %v1437, %v1437
    %v1486 = vmul.f32 %v1438, %v1438
    %v1487 = vmul.f32 %v1439, %v1439
    %v1488 = vmul.f32 %v1440, %v1440
    %v1489 = vmul.f32 %v1441, %v1441
    %v1490 = vmul.f32 %v1442, %v1442
    %v1491 = vmul.f32 %v1443, %v1443
    %v1492 = vmul.f32 %v1444, %v1444
    %v1493 = vmul.f32 %v1445, %v1445
    %v1494 = vmul.f32 %v1446, %v1446
    %v1495 = vmul.f32 %v1447, %v1447
    %v1496 = vmul.f32 %v1448, %v1448
    %v1497 = vmul.f32 %v1449, %v1449
    %v1498 = vmul.f32 %v1450, %v1450
    %v1499 = vmul.f32 %v1451, %v1451
    %v1500 = vmul.f32 %v1452, %v1452
    %v1501 = vmul.f32 %v1453, %v1453
    %v1502 = vmul.f32 %v1454, %v1454
    %v1503 = vmul.f32 %v1455, %v1455
    %v1504 = vmul.f32 %v1456, %v1456
    %v1505 = vpack.c.bf16 %v1460, %v1457
    %v1506 = vpack.c.bf16 %v1461, %v1458
    %v1507 = vpack.c.bf16 %v1462, %v1459
    %v1508 = vpack.c.bf16 %v1466, %v1463
    %v1509 = vpack.c.bf16 %v1467, %v1464
    %v1510 = vpack.c.bf16 %v1468, %v1465
    %v1511 = vpack.c.bf16 %v1472, %v1469
    %v1512 = vpack.c.bf16 %v1473, %v1470
    %v1513 = vpack.c.bf16 %v1474, %v1471
    %v1514 = vpack.c.bf16 %v1478, %v1475
    %v1515 = vpack.c.bf16 %v1479, %v1476
    %v1516 = vpack.c.bf16 %v1480, %v1477
    %v1517 = vpack.c.bf16 %v1484, %v1481
    %v1518 = vpack.c.bf16 %v1485, %v1482
    %v1519 = vpack.c.bf16 %v1486, %v1483
    %v1520 = vpack.c.bf16 %v1490, %v1487
    %v1521 = vpack.c.bf16 %v1491, %v1488
    %v1522 = vpack.c.bf16 %v1492, %v1489
    %v1523 = vpack.c.bf16 %v1496, %v1493
    %v1524 = vpack.c.bf16 %v1497, %v1494
    %v1525 = vpack.c.bf16 %v1498, %v1495
    %v1526 = vpack.c.bf16 %v1502, %v1499
    %v1527 = vpack.c.bf16 %v1503, %v1500
    %v1528 = vpack.c.bf16 %v1504, %v1501
    %v1529 = vunpack.c.l.bf16 %v1505
    %v1530 = vunpack.c.l.bf16 %v1506
    %v1531 = vunpack.c.l.bf16 %v1507
    %v1532 = vunpack.c.h.bf16 %v1505
    %v1533 = vunpack.c.h.bf16 %v1506
    %v1534 = vunpack.c.h.bf16 %v1507
    %v1535 = vunpack.c.l.bf16 %v1508
    %v1536 = vunpack.c.l.bf16 %v1509
    %v1537 = vunpack.c.l.bf16 %v1510
    %v1538 = vunpack.c.h.bf16 %v1508
    %v1539 = vunpack.c.h.bf16 %v1509
    %v1540 = vunpack.c.h.bf16 %v1510
    %v1541 = vunpack.c.l.bf16 %v1511
    %v1542 = vunpack.c.l.bf16 %v1512
    %v1543 = vunpack.c.l.bf16 %v1513
    %v1544 = vunpack.c.h.bf16 %v1511
    %v1545 = vunpack.c.h.bf16 %v1512
    %v1546 = vunpack.c.h.bf16 %v1513
    %v1547 = vunpack.c.l.bf16 %v1514
    %v1548 = vunpack.c.l.bf16 %v1515
    %v1549 = vunpack.c.l.bf16 %v1516
    %v1550 = vunpack.c.h.bf16 %v1514
    %v1551 = vunpack.c.h.bf16 %v1515
    %v1552 = vunpack.c.h.bf16 %v1516
    %v1553 = vunpack.c.l.bf16 %v1517
    %v1554 = vunpack.c.l.bf16 %v1518
    %v1555 = vunpack.c.l.bf16 %v1519
    %v1556 = vunpack.c.h.bf16 %v1517
    %v1557 = vunpack.c.h.bf16 %v1518
    %v1558 = vunpack.c.h.bf16 %v1519
    %v1559 = vunpack.c.l.bf16 %v1520
    %v1560 = vunpack.c.l.bf16 %v1521
    %v1561 = vunpack.c.l.bf16 %v1522
    %v1562 = vunpack.c.h.bf16 %v1520
    %v1563 = vunpack.c.h.bf16 %v1521
    %v1564 = vunpack.c.h.bf16 %v1522
    %v1565 = vunpack.c.l.bf16 %v1523
    %v1566 = vunpack.c.l.bf16 %v1524
    %v1567 = vunpack.c.l.bf16 %v1525
    %v1568 = vunpack.c.h.bf16 %v1523
    %v1569 = vunpack.c.h.bf16 %v1524
    %v1570 = vunpack.c.h.bf16 %v1525
    %v1571 = vunpack.c.l.bf16 %v1526
    %v1572 = vunpack.c.l.bf16 %v1527
    %v1573 = vunpack.c.l.bf16 %v1528
    %v1574 = vunpack.c.h.bf16 %v1526
    %v1575 = vunpack.c.h.bf16 %v1527
    %v1576 = vunpack.c.h.bf16 %v1528
    %v1577 = vsub.f32 %v1457, %v1529
    %v1578 = vsub.f32 %v1458, %v1530
    %v1579 = vsub.f32 %v1459, %v1531
    %v1580 = vsub.f32 %v1460, %v1532
    %v1581 = vsub.f32 %v1461, %v1533
    %v1582 = vsub.f32 %v1462, %v1534
    %v1583 = vsub.f32 %v1463, %v1535
    %v1584 = vsub.f32 %v1464, %v1536
    %v1585 = vsub.f32 %v1465, %v1537
    %v1586 = vsub.f32 %v1466, %v1538
    %v1587 = vsub.f32 %v1467, %v1539
    %v1588 = vsub.f32 %v1468, %v1540
    %v1589 = vsub.f32 %v1469, %v1541
    %v1590 = vsub.f32 %v1470, %v1542
    %v1591 = vsub.f32 %v1471, %v1543
    %v1592 = vsub.f32 %v1472, %v1544
    %v1593 = vsub.f32 %v1473, %v1545
    %v1594 = vsub.f32 %v1474, %v1546
    %v1595 = vsub.f32 %v1475, %v1547
    %v1596 = vsub.f32 %v1476, %v1548
    %v1597 = vsub.f32 %v1477, %v1549
    %v1598 = vsub.f32 %v1478, %v1550
    %v1599 = vsub.f32 %v1479, %v1551
    %v1600 = vsub.f32 %v1480, %v1552
    %v1601 = vsub.f32 %v1481, %v1553
    %v1602 = vsub.f32 %v1482, %v1554
    %v1603 = vsub.f32 %v1483, %v1555
    %v1604 = vsub.f32 %v1484, %v1556
    %v1605 = vsub.f32 %v1485, %v1557
    %v1606 = vsub.f32 %v1486, %v1558
    %v1607 = vsub.f32 %v1487, %v1559
    %v1608 = vsub.f32 %v1488, %v1560
    %v1609 = vsub.f32 %v1489, %v1561
    %v1610 = vsub.f32 %v1490, %v1562
    %v1611 = vsub.f32 %v1491, %v1563
    %v1612 = vsub.f32 %v1492, %v1564
    %v1613 = vsub.f32 %v1493, %v1565
    %v1614 = vsub.f32 %v1494, %v1566
    %v1615 = vsub.f32 %v1495, %v1567
    %v1616 = vsub.f32 %v1496, %v1568
    %v1617 = vsub.f32 %v1497, %v1569
    %v1618 = vsub.f32 %v1498, %v1570
    %v1619 = vsub.f32 %v1499, %v1571
    %v1620 = vsub.f32 %v1500, %v1572
    %v1621 = vsub.f32 %v1501, %v1573
    %v1622 = vsub.f32 %v1502, %v1574
    %v1623 = vsub.f32 %v1503, %v1575
    %v1624 = vsub.f32 %v1504, %v1576
    %v1625 = vpack.c.bf16 %v1580, %v1577
    %v1626 = vpack.c.bf16 %v1581, %v1578
    %v1627 = vpack.c.bf16 %v1582, %v1579
    %v1628 = vpack.c.bf16 %v1586, %v1583
    %v1629 = vpack.c.bf16 %v1587, %v1584
    %v1630 = vpack.c.bf16 %v1588, %v1585
    %v1631 = vpack.c.bf16 %v1592, %v1589
    %v1632 = vpack.c.bf16 %v1593, %v1590
    %v1633 = vpack.c.bf16 %v1594, %v1591
    %v1634 = vpack.c.bf16 %v1598, %v1595
    %v1635 = vpack.c.bf16 %v1599, %v1596
    %v1636 = vpack.c.bf16 %v1600, %v1597
    %v1637 = vpack.c.bf16 %v1604, %v1601
    %v1638 = vpack.c.bf16 %v1605, %v1602
    %v1639 = vpack.c.bf16 %v1606, %v1603
    %v1640 = vpack.c.bf16 %v1610, %v1607
    %v1641 = vpack.c.bf16 %v1611, %v1608
    %v1642 = vpack.c.bf16 %v1612, %v1609
    %v1643 = vpack.c.bf16 %v1616, %v1613
    %v1644 = vpack.c.bf16 %v1617, %v1614
    %v1645 = vpack.c.bf16 %v1618, %v1615
    %v1646 = vpack.c.bf16 %v1622, %v1619
    %v1647 = vpack.c.bf16 %v1623, %v1620
    %v1648 = vpack.c.bf16 %v1624, %v1621
    %1649 = vmatprep.subr.bf16.mxu0 0
    %1650 = vmatpush1.bf16.msra.mxu0 %v422
    %1651 = vmatprep.subr.bf16.mxu0 0
    %1652 = vmatpush1.bf16.msra.mxu0 %v423
    %1653 = vmatprep.subr.bf16.mxu0 0
    %1654 = vmatpush1.bf16.msra.mxu0 %v424
    %1655 = vmatprep.subr.bf16.mxu0 0
    %1656 = vmatpush1.bf16.msra.mxu0 %v425
    %1657 = vmatprep.subr.bf16.mxu0 0
    %1658 = vmatpush1.bf16.msra.mxu0 %v426
    %1659 = vmatprep.subr.bf16.mxu0 0
    %1660 = vmatpush1.bf16.msra.mxu0 %v427
    %1661 = vmatprep.subr.bf16.mxu0 0
    %1662 = vmatpush1.bf16.msra.mxu0 %v428
    %1663 = vmatprep.subr.bf16.mxu0 0
    %1664 = vmatpush1.bf16.msra.mxu0 %v429
    %1665 = vmatprep.subr.bf16.mxu0 0
    %1666 = vmatpush1.bf16.msra.mxu0 %v430
    %1667 = vmatprep.subr.bf16.mxu0 0
    %1668 = vmatpush1.bf16.msra.mxu0 %v431
    %1669 = vmatprep.subr.bf16.mxu0 0
    %1670 = vmatpush1.bf16.msra.mxu0 %v432
    %1671 = vmatprep.subr.bf16.mxu0 0
    %1672 = vmatpush1.bf16.msra.mxu0 %v433
    %1673 = vmatprep.subr.bf16.mxu0 0
    %1674 = vmatpush1.bf16.msra.mxu0 %v434
    %1675 = vmatprep.subr.bf16.mxu0 0
    %1676 = vmatpush1.bf16.msra.mxu0 %v435
    %1677 = vmatprep.subr.bf16.mxu0 0
    %1678 = vmatpush1.bf16.msra.mxu0 %v436
    %1679 = vmatprep.subr.bf16.mxu0 0
    %1680 = vmatpush1.bf16.msra.mxu0 %v437
    %1681 = vmatprep.mubr.bf16.mxu0 %v1626
    %1682 = vmatmul.mubr.bf16.gmra.mrb[0].mxu0 %v1625
    %v1683 = vpop.f32.mrb[0].mxu0
    %v1684 = vadd.f32 0.0, %v1683
    %v1685 = vpop.f32.mrb[0].mxu0
    %v1686 = vpop.f32.mrb[0].mxu0
    %v1687 = vadd.f32 0.0, %v1686
    %v1688 = vpop.f32.mrb[0].mxu0
    %1689 = vmatprep.mubr.bf16.mxu0 %v1629
    %1690 = vmatmul.mubr.bf16.gmra.mrb[0].mxu0 %v1628
    %v1691 = vpop.f32.mrb[0].mxu0
    %v1692 = vadd.f32 0.0, %v1691
    %v1693 = vpop.f32.mrb[0].mxu0
    %v1694 = vpop.f32.mrb[0].mxu0
    %v1695 = vadd.f32 0.0, %v1694
    %v1696 = vpop.f32.mrb[0].mxu0
    %1697 = vmatprep.mubr.bf16.mxu0 %v1632
    %1698 = vmatmul.mubr.bf16.gmra.mrb[0].mxu0 %v1631
    %v1699 = vpop.f32.mrb[0].mxu0
    %v1700 = vadd.f32 0.0, %v1699
    %v1701 = vpop.f32.mrb[0].mxu0
    %v1702 = vpop.f32.mrb[0].mxu0
    %v1703 = vadd.f32 0.0, %v1702
    %v1704 = vpop.f32.mrb[0].mxu0
    %1705 = vmatprep.mubr.bf16.mxu0 %v1635
    %1706 = vmatmul.mubr.bf16.gmra.mrb[0].mxu0 %v1634
    %v1707 = vpop.f32.mrb[0].mxu0
    %v1708 = vadd.f32 0.0, %v1707
    %v1709 = vpop.f32.mrb[0].mxu0
    %v1710 = vpop.f32.mrb[0].mxu0
    %v1711 = vadd.f32 0.0, %v1710
    %v1712 = vpop.f32.mrb[0].mxu0
    %1713 = vmatprep.mubr.bf16.mxu0 %v1638
    %1714 = vmatmul.mubr.bf16.gmra.mrb[0].mxu0 %v1637
    %v1715 = vpop.f32.mrb[0].mxu0
    %v1716 = vadd.f32 0.0, %v1715
    %v1717 = vpop.f32.mrb[0].mxu0
    %v1718 = vpop.f32.mrb[0].mxu0
    %v1719 = vadd.f32 0.0, %v1718
    %v1720 = vpop.f32.mrb[0].mxu0
    %1721 = vmatprep.mubr.bf16.mxu0 %v1641
    %1722 = vmatmul.mubr.bf16.gmra.mrb[0].mxu0 %v1640
    %v1723 = vpop.f32.mrb[0].mxu0
    %v1724 = vadd.f32 0.0, %v1723
    %v1725 = vpop.f32.mrb[0].mxu0
    %v1726 = vpop.f32.mrb[0].mxu0
    %v1727 = vadd.f32 0.0, %v1726
    %v1728 = vpop.f32.mrb[0].mxu0
    %1729 = vmatprep.mubr.bf16.mxu0 %v1644
    %1730 = vmatmul.mubr.bf16.gmra.mrb[0].mxu0 %v1643
    %v1731 = vpop.f32.mrb[0].mxu0
    %v1732 = vadd.f32 0.0, %v1731
    %v1733 = vpop.f32.mrb[0].mxu0
    %v1734 = vpop.f32.mrb[0].mxu0
    %v1735 = vadd.f32 0.0, %v1734
    %v1736 = vpop.f32.mrb[0].mxu0
    %1737 = vmatprep.mubr.bf16.mxu0 %v1647
    %1738 = vmatmul.mubr.bf16.gmra.mrb[0].mxu0 %v1646
    %v1739 = vpop.f32.mrb[0].mxu0
    %v1740 = vadd.f32 0.0, %v1739
    %v1741 = vpop.f32.mrb[0].mxu0
    %v1742 = vpop.f32.mrb[0].mxu0
    %v1743 = vadd.f32 0.0, %v1742
    %v1744 = vpop.f32.mrb[0].mxu0
    %1745 = vdwg.mxu0
    %1746 = vmatprep.subr.bf16.mxu0 0
    %1747 = vmatpush1.bf16.msra.mxu0 %v438
    %1748 = vmatprep.subr.bf16.mxu0 0
    %1749 = vmatpush1.bf16.msra.mxu0 %v439
    %1750 = vmatprep.subr.bf16.mxu0 0
    %1751 = vmatpush1.bf16.msra.mxu0 %v440
    %1752 = vmatprep.subr.bf16.mxu0 0
    %1753 = vmatpush1.bf16.msra.mxu0 %v441
    %1754 = vmatprep.subr.bf16.mxu0 0
    %1755 = vmatpush1.bf16.msra.mxu0 %v442
    %1756 = vmatprep.subr.bf16.mxu0 0
    %1757 = vmatpush1.bf16.msra.mxu0 %v443
    %1758 = vmatprep.subr.bf16.mxu0 0
    %1759 = vmatpush1.bf16.msra.mxu0 %v444
    %1760 = vmatprep.subr.bf16.mxu0 0
    %1761 = vmatpush1.bf16.msra.mxu0 %v445
    %1762 = vmatprep.subr.bf16.mxu0 0
    %1763 = vmatpush1.bf16.msra.mxu0 0
    %1764 = vmatprep.subr.bf16.mxu0 0
    %1765 = vmatpush1.bf16.msra.mxu0 0
    %1766 = vmatprep.subr.bf16.mxu0 0
    %1767 = vmatpush1.bf16.msra.mxu0 0
    %1768 = vmatprep.subr.bf16.mxu0 0
    %1769 = vmatpush1.bf16.msra.mxu0 0
    %1770 = vmatprep.subr.bf16.mxu0 0
    %1771 = vmatpush1.bf16.msra.mxu0 0
    %1772 = vmatprep.subr.bf16.mxu0 0
    %1773 = vmatpush1.bf16.msra.mxu0 0
    %1774 = vmatprep.subr.bf16.mxu0 0
    %1775 = vmatpush1.bf16.msra.mxu0 0
    %1776 = vmatprep.subr.bf16.mxu0 0
    %1777 = vmatpush1.bf16.msra.mxu0 0
    %1778 = vmatprep.mubr.bf16.mxu0 0
    %1779 = vmatmul.mubr.bf16.gmra.mrb[0].mxu0 %v1627
    %v1780 = vpop.f32.mrb[0].mxu0
    %v1781 = vadd.f32 %v1684, %v1780
    %v1782 = vpop.f32.mrb[0].mxu0
    %v1783 = vpop.f32.mrb[0].mxu0
    %v1784 = vadd.f32 %v1687, %v1783
    %v1785 = vpop.f32.mrb[0].mxu0
    %1786 = vmatprep.mubr.bf16.mxu0 0
    %1787 = vmatmul.mubr.bf16.gmra.mrb[0].mxu0 %v1630
    %v1788 = vpop.f32.mrb[0].mxu0
    %v1789 = vadd.f32 %v1692, %v1788
    %v1790 = vpop.f32.mrb[0].mxu0
    %v1791 = vpop.f32.mrb[0].mxu0
    %v1792 = vadd.f32 %v1695, %v1791
    %v1793 = vpop.f32.mrb[0].mxu0
    %1794 = vmatprep.mubr.bf16.mxu0 0
    %1795 = vmatmul.mubr.bf16.gmra.mrb[0].mxu0 %v1633
    %v1796 = vpop.f32.mrb[0].mxu0
    %v1797 = vadd.f32 %v1700, %v1796
    %v1798 = vpop.f32.mrb[0].mxu0
    %v1799 = vpop.f32.mrb[0].mxu0
    %v1800 = vadd.f32 %v1703, %v1799
    %v1801 = vpop.f32.mrb[0].mxu0
    %1802 = vmatprep.mubr.bf16.mxu0 0
    %1803 = vmatmul.mubr.bf16.gmra.mrb[0].mxu0 %v1636
    %v1804 = vpop.f32.mrb[0].mxu0
    %v1805 = vadd.f32 %v1708, %v1804
    %v1806 = vpop.f32.mrb[0].mxu0
    %v1807 = vpop.f32.mrb[0].mxu0
    %v1808 = vadd.f32 %v1711, %v1807
    %v1809 = vpop.f32.mrb[0].mxu0
    %1810 = vmatprep.mubr.bf16.mxu0 0
    %1811 = vmatmul.mubr.bf16.gmra.mrb[0].mxu0 %v1639
    %v1812 = vpop.f32.mrb[0].mxu0
    %v1813 = vadd.f32 %v1716, %v1812
    %v1814 = vpop.f32.mrb[0].mxu0
    %v1815 = vpop.f32.mrb[0].mxu0
    %v1816 = vadd.f32 %v1719, %v1815
    %v1817 = vpop.f32.mrb[0].mxu0
    %1818 = vmatprep.mubr.bf16.mxu0 0
    %1819 = vmatmul.mubr.bf16.gmra.mrb[0].mxu0 %v1642
    %v1820 = vpop.f32.mrb[0].mxu0
    %v1821 = vadd.f32 %v1724, %v1820
    %v1822 = vpop.f32.mrb[0].mxu0
    %v1823 = vpop.f32.mrb[0].mxu0
    %v1824 = vadd.f32 %v1727, %v1823
    %v1825 = vpop.f32.mrb[0].mxu0
    %1826 = vmatprep.mubr.bf16.mxu0 0
    %1827 = vmatmul.mubr.bf16.gmra.mrb[0].mxu0 %v1645
    %v1828 = vpop.f32.mrb[0].mxu0
    %v1829 = vadd.f32 %v1732, %v1828
    %v1830 = vpop.f32.mrb[0].mxu0
    %v1831 = vpop.f32.mrb[0].mxu0
    %v1832 = vadd.f32 %v1735, %v1831
    %v1833 = vpop.f32.mrb[0].mxu0
    %1834 = vmatprep.mubr.bf16.mxu0 0
    %1835 = vmatmul.mubr.bf16.gmra.mrb[0].mxu0 %v1648
    %v1836 = vpop.f32.mrb[0].mxu0
    %v1837 = vadd.f32 %v1740, %v1836
    %v1838 = vpop.f32.mrb[0].mxu0
    %v1839 = vpop.f32.mrb[0].mxu0
    %v1840 = vadd.f32 %v1743, %v1839
    %v1841 = vpop.f32.mrb[0].mxu0
    %1842 = vdwg.mxu0
    %1843 = vmatprep.subr.bf16.mxu0 0
    %1844 = vmatpush1.bf16.msra.mxu0 %v422
    %1845 = vmatprep.subr.bf16.mxu0 0
    %1846 = vmatpush1.bf16.msra.mxu0 %v423
    %1847 = vmatprep.subr.bf16.mxu0 0
    %1848 = vmatpush1.bf16.msra.mxu0 %v424
    %1849 = vmatprep.subr.bf16.mxu0 0
    %1850 = vmatpush1.bf16.msra.mxu0 %v425
    %1851 = vmatprep.subr.bf16.mxu0 0
    %1852 = vmatpush1.bf16.msra.mxu0 %v426
    %1853 = vmatprep.subr.bf16.mxu0 0
    %1854 = vmatpush1.bf16.msra.mxu0 %v427
    %1855 = vmatprep.subr.bf16.mxu0 0
    %1856 = vmatpush1.bf16.msra.mxu0 %v428
    %1857 = vmatprep.subr.bf16.mxu0 0
    %1858 = vmatpush1.bf16.msra.mxu0 %v429
    %1859 = vmatprep.subr.bf16.mxu0 0
    %1860 = vmatpush1.bf16.msra.mxu0 %v430
    %1861 = vmatprep.subr.bf16.mxu0 0
    %1862 = vmatpush1.bf16.msra.mxu0 %v431
    %1863 = vmatprep.subr.bf16.mxu0 0
    %1864 = vmatpush1.bf16.msra.mxu0 %v432
    %1865 = vmatprep.subr.bf16.mxu0 0
    %1866 = vmatpush1.bf16.msra.mxu0 %v433
    %1867 = vmatprep.subr.bf16.mxu0 0
    %1868 = vmatpush1.bf16.msra.mxu0 %v434
    %1869 = vmatprep.subr.bf16.mxu0 0
    %1870 = vmatpush1.bf16.msra.mxu0 %v435
    %1871 = vmatprep.subr.bf16.mxu0 0
    %1872 = vmatpush1.bf16.msra.mxu0 %v436
    %1873 = vmatprep.subr.bf16.mxu0 0
    %1874 = vmatpush1.bf16.msra.mxu0 %v437
    %1875 = vmatprep.mubr.bf16.mxu0 %v1506
    %1876 = vmatmul.mubr.bf16.gmra.mrb[0].mxu0 %v1505
    %v1877 = vpop.f32.mrb[0].mxu0
    %v1878 = vadd.f32 %v1781, %v1877
    %v1879 = vpop.f32.mrb[0].mxu0
    %v1880 = vpop.f32.mrb[0].mxu0
    %v1881 = vadd.f32 %v1784, %v1880
    %v1882 = vpop.f32.mrb[0].mxu0
    %1883 = vmatprep.mubr.bf16.mxu0 %v1509
    %1884 = vmatmul.mubr.bf16.gmra.mrb[0].mxu0 %v1508
    %v1885 = vpop.f32.mrb[0].mxu0
    %v1886 = vadd.f32 %v1789, %v1885
    %v1887 = vpop.f32.mrb[0].mxu0
    %v1888 = vpop.f32.mrb[0].mxu0
    %v1889 = vadd.f32 %v1792, %v1888
    %v1890 = vpop.f32.mrb[0].mxu0
    %1891 = vmatprep.mubr.bf16.mxu0 %v1512
    %1892 = vmatmul.mubr.bf16.gmra.mrb[0].mxu0 %v1511
    %v1893 = vpop.f32.mrb[0].mxu0
    %v1894 = vadd.f32 %v1797, %v1893
    %v1895 = vpop.f32.mrb[0].mxu0
    %v1896 = vpop.f32.mrb[0].mxu0
    %v1897 = vadd.f32 %v1800, %v1896
    %v1898 = vpop.f32.mrb[0].mxu0
    %1899 = vmatprep.mubr.bf16.mxu0 %v1515
    %1900 = vmatmul.mubr.bf16.gmra.mrb[0].mxu0 %v1514
    %v1901 = vpop.f32.mrb[0].mxu0
    %v1902 = vadd.f32 %v1805, %v1901
    %v1903 = vpop.f32.mrb[0].mxu0
    %v1904 = vpop.f32.mrb[0].mxu0
    %v1905 = vadd.f32 %v1808, %v1904
    %v1906 = vpop.f32.mrb[0].mxu0
    %1907 = vmatprep.mubr.bf16.mxu0 %v1518
    %1908 = vmatmul.mubr.bf16.gmra.mrb[0].mxu0 %v1517
    %v1909 = vpop.f32.mrb[0].mxu0
    %v1910 = vadd.f32 %v1813, %v1909
    %v1911 = vpop.f32.mrb[0].mxu0
    %v1912 = vpop.f32.mrb[0].mxu0
    %v1913 = vadd.f32 %v1816, %v1912
    %v1914 = vpop.f32.mrb[0].mxu0
    %1915 = vmatprep.mubr.bf16.mxu0 %v1521
    %1916 = vmatmul.mubr.bf16.gmra.mrb[0].mxu0 %v1520
    %v1917 = vpop.f32.mrb[0].mxu0
    %v1918 = vadd.f32 %v1821, %v1917
    %v1919 = vpop.f32.mrb[0].mxu0
    %v1920 = vpop.f32.mrb[0].mxu0
    %v1921 = vadd.f32 %v1824, %v1920
    %v1922 = vpop.f32.mrb[0].mxu0
    %1923 = vmatprep.mubr.bf16.mxu0 %v1524
    %1924 = vmatmul.mubr.bf16.gmra.mrb[0].mxu0 %v1523
    %v1925 = vpop.f32.mrb[0].mxu0
    %v1926 = vadd.f32 %v1829, %v1925
    %v1927 = vpop.f32.mrb[0].mxu0
    %v1928 = vpop.f32.mrb[0].mxu0
    %v1929 = vadd.f32 %v1832, %v1928
    %v1930 = vpop.f32.mrb[0].mxu0
    %1931 = vmatprep.mubr.bf16.mxu0 %v1527
    %1932 = vmatmul.mubr.bf16.gmra.mrb[0].mxu0 %v1526
    %v1933 = vpop.f32.mrb[0].mxu0
    %v1934 = vadd.f32 %v1837, %v1933
    %v1935 = vpop.f32.mrb[0].mxu0
    %v1936 = vpop.f32.mrb[0].mxu0
    %v1937 = vadd.f32 %v1840, %v1936
    %v1938 = vpop.f32.mrb[0].mxu0
    %1939 = vdwg.mxu0
    %1940 = vmatprep.subr.bf16.mxu0 0
    %1941 = vmatpush1.bf16.msra.mxu0 %v438
    %1942 = vmatprep.subr.bf16.mxu0 0
    %1943 = vmatpush1.bf16.msra.mxu0 %v439
    %1944 = vmatprep.subr.bf16.mxu0 0
    %1945 = vmatpush1.bf16.msra.mxu0 %v440
    %1946 = vmatprep.subr.bf16.mxu0 0
    %1947 = vmatpush1.bf16.msra.mxu0 %v441
    %1948 = vmatprep.subr.bf16.mxu0 0
    %1949 = vmatpush1.bf16.msra.mxu0 %v442
    %1950 = vmatprep.subr.bf16.mxu0 0
    %1951 = vmatpush1.bf16.msra.mxu0 %v443
    %1952 = vmatprep.subr.bf16.mxu0 0
    %1953 = vmatpush1.bf16.msra.mxu0 %v444
    %1954 = vmatprep.subr.bf16.mxu0 0
    %1955 = vmatpush1.bf16.msra.mxu0 %v445
    %1956 = vmatprep.subr.bf16.mxu0 0
    %1957 = vmatpush1.bf16.msra.mxu0 0
    %1958 = vmatprep.subr.bf16.mxu0 0
    %1959 = vmatpush1.bf16.msra.mxu0 0
    %1960 = vmatprep.subr.bf16.mxu0 0
    %1961 = vmatpush1.bf16.msra.mxu0 0
    %1962 = vmatprep.subr.bf16.mxu0 0
    %1963 = vmatpush1.bf16.msra.mxu0 0
    %1964 = vmatprep.subr.bf16.mxu0 0
    %1965 = vmatpush1.bf16.msra.mxu0 0
    %1966 = vmatprep.subr.bf16.mxu0 0
    %1967 = vmatpush1.bf16.msra.mxu0 0
    %1968 = vmatprep.subr.bf16.mxu0 0
    %1969 = vmatpush1.bf16.msra.mxu0 0
    %1970 = vmatprep.subr.bf16.mxu0 0
    %1971 = vmatpush1.bf16.msra.mxu0 0
    %1972 = vmatprep.mubr.bf16.mxu0 0
    %1973 = vmatmul.mubr.bf16.gmra.mrb[0].mxu0 %v1507
    %v1974 = vpop.f32.mrb[0].mxu0
    %v1975 = vadd.f32 %v1878, %v1974
    %v1976 = vpop.f32.mrb[0].mxu0
    %v1977 = vpop.f32.mrb[0].mxu0
    %v1978 = vadd.f32 %v1881, %v1977
    %v1979 = vpop.f32.mrb[0].mxu0
    %1980 = vmatprep.mubr.bf16.mxu0 0
    %1981 = vmatmul.mubr.bf16.gmra.mrb[0].mxu0 %v1510
    %v1982 = vpop.f32.mrb[0].mxu0
    %v1983 = vadd.f32 %v1886, %v1982
    %v1984 = vpop.f32.mrb[0].mxu0
    %v1985 = vpop.f32.mrb[0].mxu0
    %v1986 = vadd.f32 %v1889, %v1985
    %v1987 = vpop.f32.mrb[0].mxu0
    %1988 = vmatprep.mubr.bf16.mxu0 0
    %1989 = vmatmul.mubr.bf16.gmra.mrb[0].mxu0 %v1513
    %v1990 = vpop.f32.mrb[0].mxu0
    %v1991 = vadd.f32 %v1894, %v1990
    %v1992 = vpop.f32.mrb[0].mxu0
    %v1993 = vpop.f32.mrb[0].mxu0
    %v1994 = vadd.f32 %v1897, %v1993
    %v1995 = vpop.f32.mrb[0].mxu0
    %1996 = vmatprep.mubr.bf16.mxu0 0
    %1997 = vmatmul.mubr.bf16.gmra.mrb[0].mxu0 %v1516
    %v1998 = vpop.f32.mrb[0].mxu0
    %v1999 = vadd.f32 %v1902, %v1998
    %v2000 = vpop.f32.mrb[0].mxu0
    %v2001 = vpop.f32.mrb[0].mxu0
    %v2002 = vadd.f32 %v1905, %v2001
    %v2003 = vpop.f32.mrb[0].mxu0
    %2004 = vmatprep.mubr.bf16.mxu0 0
    %2005 = vmatmul.mubr.bf16.gmra.mrb[0].mxu0 %v1519
    %v2006 = vpop.f32.mrb[0].mxu0
    %v2007 = vadd.f32 %v1910, %v2006
    %v2008 = vpop.f32.mrb[0].mxu0
    %v2009 = vpop.f32.mrb[0].mxu0
    %v2010 = vadd.f32 %v1913, %v2009
    %v2011 = vpop.f32.mrb[0].mxu0
    %2012 = vmatprep.mubr.bf16.mxu0 0
    %2013 = vmatmul.mubr.bf16.gmra.mrb[0].mxu0 %v1522
    %v2014 = vpop.f32.mrb[0].mxu0
    %v2015 = vadd.f32 %v1918, %v2014
    %v2016 = vpop.f32.mrb[0].mxu0
    %v2017 = vpop.f32.mrb[0].mxu0
    %v2018 = vadd.f32 %v1921, %v2017
    %v2019 = vpop.f32.mrb[0].mxu0
    %2020 = vmatprep.mubr.bf16.mxu0 0
    %2021 = vmatmul.mubr.bf16.gmra.mrb[0].mxu0 %v1525
    %v2022 = vpop.f32.mrb[0].mxu0
    %v2023 = vadd.f32 %v1926, %v2022
    %v2024 = vpop.f32.mrb[0].mxu0
    %v2025 = vpop.f32.mrb[0].mxu0
    %v2026 = vadd.f32 %v1929, %v2025
    %v2027 = vpop.f32.mrb[0].mxu0
    %2028 = vmatprep.mubr.bf16.mxu0 0
    %2029 = vmatmul.mubr.bf16.gmra.mrb[0].mxu0 %v1528
    %v2030 = vpop.f32.mrb[0].mxu0
    %v2031 = vadd.f32 %v1934, %v2030
    %v2032 = vpop.f32.mrb[0].mxu0
    %v2033 = vpop.f32.mrb[0].mxu0
    %v2034 = vadd.f32 %v1937, %v2033
    %v2035 = vpop.f32.mrb[0].mxu0
    %2036 = vdwg.mxu0
    %v2037 = vmul.f32 %v1975, 0.020833334
    %v2038 = vmul.f32 %v1978, 0.020833334
    %v2039 = vmul.f32 %v1983, 0.020833334
    %v2040 = vmul.f32 %v1986, 0.020833334
    %v2041 = vmul.f32 %v1991, 0.020833334
    %v2042 = vmul.f32 %v1994, 0.020833334
    %v2043 = vmul.f32 %v1999, 0.020833334
    %v2044 = vmul.f32 %v2002, 0.020833334
    %v2045 = vmul.f32 %v2007, 0.020833334
    %v2046 = vmul.f32 %v2010, 0.020833334
    %v2047 = vmul.f32 %v2015, 0.020833334
    %v2048 = vmul.f32 %v2018, 0.020833334
    %v2049 = vmul.f32 %v2023, 0.020833334
    %v2050 = vmul.f32 %v2026, 0.020833334
    %v2051 = vmul.f32 %v2031, 0.020833334
    %v2052 = vmul.f32 %v2034, 0.020833334
    %v2053 = vadd.f32 %v2037, 1e-06
    %v2054 = vadd.f32 %v2038, 1e-06
    %v2055 = vadd.f32 %v2039, 1e-06
    %v2056 = vadd.f32 %v2040, 1e-06
    %v2057 = vadd.f32 %v2041, 1e-06
    %v2058 = vadd.f32 %v2042, 1e-06
    %v2059 = vadd.f32 %v2043, 1e-06
    %v2060 = vadd.f32 %v2044, 1e-06
    %v2061 = vadd.f32 %v2045, 1e-06
    %v2062 = vadd.f32 %v2046, 1e-06
    %v2063 = vadd.f32 %v2047, 1e-06
    %v2064 = vadd.f32 %v2048, 1e-06
    %v2065 = vadd.f32 %v2049, 1e-06
    %v2066 = vadd.f32 %v2050, 1e-06
    %v2067 = vadd.f32 %v2051, 1e-06
    %v2068 = vadd.f32 %v2052, 1e-06
    %v2069 = vrsqrt.pop %v2053
    %v2070 = vrsqrt.pop %v2054
    %v2071 = vrsqrt.pop %v2055
    %v2072 = vrsqrt.pop %v2056
    %v2073 = vrsqrt.pop %v2057
    %v2074 = vrsqrt.pop %v2058
    %v2075 = vrsqrt.pop %v2059
    %v2076 = vrsqrt.pop %v2060
    %v2077 = vrsqrt.pop %v2061
    %v2078 = vrsqrt.pop %v2062
    %v2079 = vrsqrt.pop %v2063
    %v2080 = vrsqrt.pop %v2064
    %v2081 = vrsqrt.pop %v2065
    %v2082 = vrsqrt.pop %v2066
    %v2083 = vrsqrt.pop %v2067
    %v2084 = vrsqrt.pop %v2068
    %v2085 = vpack.c.bf16 %v2070, %v2069
    %v2086 = vpack.c.bf16 %v2072, %v2071
    %v2087 = vpack.c.bf16 %v2074, %v2073
    %v2088 = vpack.c.bf16 %v2076, %v2075
    %v2089 = vpack.c.bf16 %v2078, %v2077
    %v2090 = vpack.c.bf16 %v2080, %v2079
    %v2091 = vpack.c.bf16 %v2082, %v2081
    %v2092 = vpack.c.bf16 %v2084, %v2083
    %v2093 = vunpack.c.l.bf16 %v2085
    %v2094 = vunpack.c.h.bf16 %v2085
    %v2095 = vunpack.c.l.bf16 %v2086
    %v2096 = vunpack.c.h.bf16 %v2086
    %v2097 = vunpack.c.l.bf16 %v2087
    %v2098 = vunpack.c.h.bf16 %v2087
    %v2099 = vunpack.c.l.bf16 %v2088
    %v2100 = vunpack.c.h.bf16 %v2088
    %v2101 = vunpack.c.l.bf16 %v2089
    %v2102 = vunpack.c.h.bf16 %v2089
    %v2103 = vunpack.c.l.bf16 %v2090
    %v2104 = vunpack.c.h.bf16 %v2090
    %v2105 = vunpack.c.l.bf16 %v2091
    %v2106 = vunpack.c.h.bf16 %v2091
    %v2107 = vunpack.c.l.bf16 %v2092
    %v2108 = vunpack.c.h.bf16 %v2092
    %v2109 = vsub.f32 %v2069, %v2093
    %v2110 = vsub.f32 %v2070, %v2094
    %v2111 = vsub.f32 %v2071, %v2095
    %v2112 = vsub.f32 %v2072, %v2096
    %v2113 = vsub.f32 %v2073, %v2097
    %v2114 = vsub.f32 %v2074, %v2098
    %v2115 = vsub.f32 %v2075, %v2099
    %v2116 = vsub.f32 %v2076, %v2100
    %v2117 = vsub.f32 %v2077, %v2101
    %v2118 = vsub.f32 %v2078, %v2102
    %v2119 = vsub.f32 %v2079, %v2103
    %v2120 = vsub.f32 %v2080, %v2104
    %v2121 = vsub.f32 %v2081, %v2105
    %v2122 = vsub.f32 %v2082, %v2106
    %v2123 = vsub.f32 %v2083, %v2107
    %v2124 = vsub.f32 %v2084, %v2108
    %v2125 = vpack.c.bf16 %v2110, %v2109
    %v2126 = vpack.c.bf16 %v2112, %v2111
    %v2127 = vpack.c.bf16 %v2114, %v2113
    %v2128 = vpack.c.bf16 %v2116, %v2115
    %v2129 = vpack.c.bf16 %v2118, %v2117
    %v2130 = vpack.c.bf16 %v2120, %v2119
    %v2131 = vpack.c.bf16 %v2122, %v2121
    %v2132 = vpack.c.bf16 %v2124, %v2123
    %v2134 = vsel %vm930, %v2125, 0
    %v2137 = vsel %vm930, %v2126, 0
    %v2140 = vsel %vm930, %v2127, 0
    %v2143 = vsel %vm930, %v2128, 0
    %v2146 = vsel %vm930, %v2129, 0
    %v2149 = vsel %vm930, %v2130, 0
    %v2152 = vsel %vm930, %v2131, 0
    %v2155 = vsel %vm930, %v2132, 0
    %2157 = vmatprep.subr.bf16.mxu0 %v960
    %2158 = vmatpush1.bf16.msra.mxu0 %v957
    %2159 = vmatprep.subr.bf16.mxu0 0
    %2160 = vmatpush1.bf16.msra.mxu0 0
    %2161 = vmatprep.subr.bf16.mxu0 0
    %2162 = vmatpush1.bf16.msra.mxu0 0
    %2163 = vmatprep.subr.bf16.mxu0 0
    %2164 = vmatpush1.bf16.msra.mxu0 0
    %2165 = vmatprep.subr.bf16.mxu0 0
    %2166 = vmatpush1.bf16.msra.mxu0 0
    %2167 = vmatprep.subr.bf16.mxu0 0
    %2168 = vmatpush1.bf16.msra.mxu0 0
    %2169 = vmatprep.subr.bf16.mxu0 0
    %2170 = vmatpush1.bf16.msra.mxu0 0
    %2171 = vmatprep.subr.bf16.mxu0 0
    %2172 = vmatpush1.bf16.msra.mxu0 0
    %2173 = vmatprep.subr.bf16.mxu0 0
    %2174 = vmatpush1.bf16.msra.mxu0 0
    %2175 = vmatprep.subr.bf16.mxu0 0
    %2176 = vmatpush1.bf16.msra.mxu0 0
    %2177 = vmatprep.subr.bf16.mxu0 0
    %2178 = vmatpush1.bf16.msra.mxu0 0
    %2179 = vmatprep.subr.bf16.mxu0 0
    %2180 = vmatpush1.bf16.msra.mxu0 0
    %2181 = vmatprep.subr.bf16.mxu0 0
    %2182 = vmatpush1.bf16.msra.mxu0 0
    %2183 = vmatprep.subr.bf16.mxu0 0
    %2184 = vmatpush1.bf16.msra.mxu0 0
    %2185 = vmatprep.subr.bf16.mxu0 0
    %2186 = vmatpush1.bf16.msra.mxu0 0
    %2187 = vmatprep.subr.bf16.mxu0 0
    %2188 = vmatpush1.bf16.msra.mxu0 0
    %2189 = vmatprep.mubr.bf16.mxu0 0
    %2190 = vmatmul.mubr.bf16.gmra.mrb[0].mxu0 %v2134
    %v2191 = vpop.f32.mrb[0].mxu0
    %v2192 = vadd.f32 0.0, %v2191
    %v2193 = vpop.f32.mrb[0].mxu0
    %v2194 = vadd.f32 0.0, %v2193
    %v2195 = vpop.f32.mrb[0].mxu0
    %v2196 = vadd.f32 0.0, %v2195
    %v2197 = vpop.f32.mrb[0].mxu0
    %v2198 = vadd.f32 0.0, %v2197
    %2199 = vmatprep.mubr.bf16.mxu0 0
    %2200 = vmatmul.mubr.bf16.gmra.mrb[0].mxu0 %v2137
    %v2201 = vpop.f32.mrb[0].mxu0
    %v2202 = vadd.f32 0.0, %v2201
    %v2203 = vpop.f32.mrb[0].mxu0
    %v2204 = vadd.f32 0.0, %v2203
    %v2205 = vpop.f32.mrb[0].mxu0
    %v2206 = vadd.f32 0.0, %v2205
    %v2207 = vpop.f32.mrb[0].mxu0
    %v2208 = vadd.f32 0.0, %v2207
    %2209 = vmatprep.mubr.bf16.mxu0 0
    %2210 = vmatmul.mubr.bf16.gmra.mrb[0].mxu0 %v2140
    %v2211 = vpop.f32.mrb[0].mxu0
    %v2212 = vadd.f32 0.0, %v2211
    %v2213 = vpop.f32.mrb[0].mxu0
    %v2214 = vadd.f32 0.0, %v2213
    %v2215 = vpop.f32.mrb[0].mxu0
    %v2216 = vadd.f32 0.0, %v2215
    %v2217 = vpop.f32.mrb[0].mxu0
    %v2218 = vadd.f32 0.0, %v2217
    %2219 = vmatprep.mubr.bf16.mxu0 0
    %2220 = vmatmul.mubr.bf16.gmra.mrb[0].mxu0 %v2143
    %v2221 = vpop.f32.mrb[0].mxu0
    %v2222 = vadd.f32 0.0, %v2221
    %v2223 = vpop.f32.mrb[0].mxu0
    %v2224 = vadd.f32 0.0, %v2223
    %v2225 = vpop.f32.mrb[0].mxu0
    %v2226 = vadd.f32 0.0, %v2225
    %v2227 = vpop.f32.mrb[0].mxu0
    %v2228 = vadd.f32 0.0, %v2227
    %2229 = vmatprep.mubr.bf16.mxu0 0
    %2230 = vmatmul.mubr.bf16.gmra.mrb[0].mxu0 %v2146
    %v2231 = vpop.f32.mrb[0].mxu0
    %v2232 = vadd.f32 0.0, %v2231
    %v2233 = vpop.f32.mrb[0].mxu0
    %v2234 = vadd.f32 0.0, %v2233
    %v2235 = vpop.f32.mrb[0].mxu0
    %v2236 = vadd.f32 0.0, %v2235
    %v2237 = vpop.f32.mrb[0].mxu0
    %v2238 = vadd.f32 0.0, %v2237
    %2239 = vmatprep.mubr.bf16.mxu0 0
    %2240 = vmatmul.mubr.bf16.gmra.mrb[0].mxu0 %v2149
    %v2241 = vpop.f32.mrb[0].mxu0
    %v2242 = vadd.f32 0.0, %v2241
    %v2243 = vpop.f32.mrb[0].mxu0
    %v2244 = vadd.f32 0.0, %v2243
    %v2245 = vpop.f32.mrb[0].mxu0
    %v2246 = vadd.f32 0.0, %v2245
    %v2247 = vpop.f32.mrb[0].mxu0
    %v2248 = vadd.f32 0.0, %v2247
    %2249 = vmatprep.mubr.bf16.mxu0 0
    %2250 = vmatmul.mubr.bf16.gmra.mrb[0].mxu0 %v2152
    %v2251 = vpop.f32.mrb[0].mxu0
    %v2252 = vadd.f32 0.0, %v2251
    %v2253 = vpop.f32.mrb[0].mxu0
    %v2254 = vadd.f32 0.0, %v2253
    %v2255 = vpop.f32.mrb[0].mxu0
    %v2256 = vadd.f32 0.0, %v2255
    %v2257 = vpop.f32.mrb[0].mxu0
    %v2258 = vadd.f32 0.0, %v2257
    %2259 = vmatprep.mubr.bf16.mxu0 0
    %2260 = vmatmul.mubr.bf16.gmra.mrb[0].mxu0 %v2155
    %v2261 = vpop.f32.mrb[0].mxu0
    %v2262 = vadd.f32 0.0, %v2261
    %v2263 = vpop.f32.mrb[0].mxu0
    %v2264 = vadd.f32 0.0, %v2263
    %v2265 = vpop.f32.mrb[0].mxu0
    %v2266 = vadd.f32 0.0, %v2265
    %v2267 = vpop.f32.mrb[0].mxu0
    %v2268 = vadd.f32 0.0, %v2267
    %2269 = vdwg.mxu0
    %2270 = vmatprep.subr.bf16.mxu0 0
    %2271 = vmatpush1.bf16.msra.mxu0 %v963
    %2272 = vmatprep.subr.bf16.mxu0 0
    %2273 = vmatpush1.bf16.msra.mxu0 0
    %2274 = vmatprep.subr.bf16.mxu0 0
    %2275 = vmatpush1.bf16.msra.mxu0 0
    %2276 = vmatprep.subr.bf16.mxu0 0
    %2277 = vmatpush1.bf16.msra.mxu0 0
    %2278 = vmatprep.subr.bf16.mxu0 0
    %2279 = vmatpush1.bf16.msra.mxu0 0
    %2280 = vmatprep.subr.bf16.mxu0 0
    %2281 = vmatpush1.bf16.msra.mxu0 0
    %2282 = vmatprep.subr.bf16.mxu0 0
    %2283 = vmatpush1.bf16.msra.mxu0 0
    %2284 = vmatprep.subr.bf16.mxu0 0
    %2285 = vmatpush1.bf16.msra.mxu0 0
    %2286 = vmatprep.subr.bf16.mxu0 0
    %2287 = vmatpush1.bf16.msra.mxu0 0
    %2288 = vmatprep.subr.bf16.mxu0 0
    %2289 = vmatpush1.bf16.msra.mxu0 0
    %2290 = vmatprep.subr.bf16.mxu0 0
    %2291 = vmatpush1.bf16.msra.mxu0 0
    %2292 = vmatprep.subr.bf16.mxu0 0
    %2293 = vmatpush1.bf16.msra.mxu0 0
    %2294 = vmatprep.subr.bf16.mxu0 0
    %2295 = vmatpush1.bf16.msra.mxu0 0
    %2296 = vmatprep.subr.bf16.mxu0 0
    %2297 = vmatpush1.bf16.msra.mxu0 0
    %2298 = vmatprep.subr.bf16.mxu0 0
    %2299 = vmatpush1.bf16.msra.mxu0 0
    %2300 = vmatprep.subr.bf16.mxu0 0
    %2301 = vmatpush1.bf16.msra.mxu0 0
    %2302 = vmatprep.mubr.bf16.mxu0 0
    %2303 = vmatmul.mubr.bf16.gmra.mrb[0].mxu0 %v2134
    %v2304 = vpop.f32.mrb[0].mxu0
    %v2305 = vadd.f32 0.0, %v2304
    %v2306 = vpop.f32.mrb[0].mxu0
    %v2307 = vpop.f32.mrb[0].mxu0
    %v2308 = vadd.f32 0.0, %v2307
    %v2309 = vpop.f32.mrb[0].mxu0
    %2310 = vmatprep.mubr.bf16.mxu0 0
    %2311 = vmatmul.mubr.bf16.gmra.mrb[0].mxu0 %v2137
    %v2312 = vpop.f32.mrb[0].mxu0
    %v2313 = vadd.f32 0.0, %v2312
    %v2314 = vpop.f32.mrb[0].mxu0
    %v2315 = vpop.f32.mrb[0].mxu0
    %v2316 = vadd.f32 0.0, %v2315
    %v2317 = vpop.f32.mrb[0].mxu0
    %2318 = vmatprep.mubr.bf16.mxu0 0
    %2319 = vmatmul.mubr.bf16.gmra.mrb[0].mxu0 %v2140
    %v2320 = vpop.f32.mrb[0].mxu0
    %v2321 = vadd.f32 0.0, %v2320
    %v2322 = vpop.f32.mrb[0].mxu0
    %v2323 = vpop.f32.mrb[0].mxu0
    %v2324 = vadd.f32 0.0, %v2323
    %v2325 = vpop.f32.mrb[0].mxu0
    %2326 = vmatprep.mubr.bf16.mxu0 0
    %2327 = vmatmul.mubr.bf16.gmra.mrb[0].mxu0 %v2143
    %v2328 = vpop.f32.mrb[0].mxu0
    %v2329 = vadd.f32 0.0, %v2328
    %v2330 = vpop.f32.mrb[0].mxu0
    %v2331 = vpop.f32.mrb[0].mxu0
    %v2332 = vadd.f32 0.0, %v2331
    %v2333 = vpop.f32.mrb[0].mxu0
    %2334 = vmatprep.mubr.bf16.mxu0 0
    %2335 = vmatmul.mubr.bf16.gmra.mrb[0].mxu0 %v2146
    %v2336 = vpop.f32.mrb[0].mxu0
    %v2337 = vadd.f32 0.0, %v2336
    %v2338 = vpop.f32.mrb[0].mxu0
    %v2339 = vpop.f32.mrb[0].mxu0
    %v2340 = vadd.f32 0.0, %v2339
    %v2341 = vpop.f32.mrb[0].mxu0
    %2342 = vmatprep.mubr.bf16.mxu0 0
    %2343 = vmatmul.mubr.bf16.gmra.mrb[0].mxu0 %v2149
    %v2344 = vpop.f32.mrb[0].mxu0
    %v2345 = vadd.f32 0.0, %v2344
    %v2346 = vpop.f32.mrb[0].mxu0
    %v2347 = vpop.f32.mrb[0].mxu0
    %v2348 = vadd.f32 0.0, %v2347
    %v2349 = vpop.f32.mrb[0].mxu0
    %2350 = vmatprep.mubr.bf16.mxu0 0
    %2351 = vmatmul.mubr.bf16.gmra.mrb[0].mxu0 %v2152
    %v2352 = vpop.f32.mrb[0].mxu0
    %v2353 = vadd.f32 0.0, %v2352
    %v2354 = vpop.f32.mrb[0].mxu0
    %v2355 = vpop.f32.mrb[0].mxu0
    %v2356 = vadd.f32 0.0, %v2355
    %v2357 = vpop.f32.mrb[0].mxu0
    %2358 = vmatprep.mubr.bf16.mxu0 0
    %2359 = vmatmul.mubr.bf16.gmra.mrb[0].mxu0 %v2155
    %v2360 = vpop.f32.mrb[0].mxu0
    %v2361 = vadd.f32 0.0, %v2360
    %v2362 = vpop.f32.mrb[0].mxu0
    %v2363 = vpop.f32.mrb[0].mxu0
    %v2364 = vadd.f32 0.0, %v2363
    %v2365 = vpop.f32.mrb[0].mxu0
    %2366 = vdwg.mxu0
    %v2368 = vsel %vm930, %v2085, 0
    %v2371 = vsel %vm930, %v2086, 0
    %v2374 = vsel %vm930, %v2087, 0
    %v2377 = vsel %vm930, %v2088, 0
    %v2380 = vsel %vm930, %v2089, 0
    %v2383 = vsel %vm930, %v2090, 0
    %v2386 = vsel %vm930, %v2091, 0
    %v2389 = vsel %vm930, %v2092, 0
    %2391 = vmatprep.subr.bf16.mxu0 %v960
    %2392 = vmatpush1.bf16.msra.mxu0 %v957
    %2393 = vmatprep.subr.bf16.mxu0 0
    %2394 = vmatpush1.bf16.msra.mxu0 0
    %2395 = vmatprep.subr.bf16.mxu0 0
    %2396 = vmatpush1.bf16.msra.mxu0 0
    %2397 = vmatprep.subr.bf16.mxu0 0
    %2398 = vmatpush1.bf16.msra.mxu0 0
    %2399 = vmatprep.subr.bf16.mxu0 0
    %2400 = vmatpush1.bf16.msra.mxu0 0
    %2401 = vmatprep.subr.bf16.mxu0 0
    %2402 = vmatpush1.bf16.msra.mxu0 0
    %2403 = vmatprep.subr.bf16.mxu0 0
    %2404 = vmatpush1.bf16.msra.mxu0 0
    %2405 = vmatprep.subr.bf16.mxu0 0
    %2406 = vmatpush1.bf16.msra.mxu0 0
    %2407 = vmatprep.subr.bf16.mxu0 0
    %2408 = vmatpush1.bf16.msra.mxu0 0
    %2409 = vmatprep.subr.bf16.mxu0 0
    %2410 = vmatpush1.bf16.msra.mxu0 0
    %2411 = vmatprep.subr.bf16.mxu0 0
    %2412 = vmatpush1.bf16.msra.mxu0 0
    %2413 = vmatprep.subr.bf16.mxu0 0
    %2414 = vmatpush1.bf16.msra.mxu0 0
    %2415 = vmatprep.subr.bf16.mxu0 0
    %2416 = vmatpush1.bf16.msra.mxu0 0
    %2417 = vmatprep.subr.bf16.mxu0 0
    %2418 = vmatpush1.bf16.msra.mxu0 0
    %2419 = vmatprep.subr.bf16.mxu0 0
    %2420 = vmatpush1.bf16.msra.mxu0 0
    %2421 = vmatprep.subr.bf16.mxu0 0
    %2422 = vmatpush1.bf16.msra.mxu0 0
    %2423 = vmatprep.mubr.bf16.mxu0 0
    %2424 = vmatmul.mubr.bf16.gmra.mrb[0].mxu0 %v2368
    %v2425 = vpop.f32.mrb[0].mxu0
    %v2426 = vadd.f32 %v2192, %v2425
    %v2427 = vpop.f32.mrb[0].mxu0
    %v2428 = vadd.f32 %v2194, %v2427
    %v2429 = vpop.f32.mrb[0].mxu0
    %v2430 = vadd.f32 %v2196, %v2429
    %v2431 = vpop.f32.mrb[0].mxu0
    %v2432 = vadd.f32 %v2198, %v2431
    %2433 = vmatprep.mubr.bf16.mxu0 0
    %2434 = vmatmul.mubr.bf16.gmra.mrb[0].mxu0 %v2371
    %v2435 = vpop.f32.mrb[0].mxu0
    %v2436 = vadd.f32 %v2202, %v2435
    %v2437 = vpop.f32.mrb[0].mxu0
    %v2438 = vadd.f32 %v2204, %v2437
    %v2439 = vpop.f32.mrb[0].mxu0
    %v2440 = vadd.f32 %v2206, %v2439
    %v2441 = vpop.f32.mrb[0].mxu0
    %v2442 = vadd.f32 %v2208, %v2441
    %2443 = vmatprep.mubr.bf16.mxu0 0
    %2444 = vmatmul.mubr.bf16.gmra.mrb[0].mxu0 %v2374
    %v2445 = vpop.f32.mrb[0].mxu0
    %v2446 = vadd.f32 %v2212, %v2445
    %v2447 = vpop.f32.mrb[0].mxu0
    %v2448 = vadd.f32 %v2214, %v2447
    %v2449 = vpop.f32.mrb[0].mxu0
    %v2450 = vadd.f32 %v2216, %v2449
    %v2451 = vpop.f32.mrb[0].mxu0
    %v2452 = vadd.f32 %v2218, %v2451
    %2453 = vmatprep.mubr.bf16.mxu0 0
    %2454 = vmatmul.mubr.bf16.gmra.mrb[0].mxu0 %v2377
    %v2455 = vpop.f32.mrb[0].mxu0
    %v2456 = vadd.f32 %v2222, %v2455
    %v2457 = vpop.f32.mrb[0].mxu0
    %v2458 = vadd.f32 %v2224, %v2457
    %v2459 = vpop.f32.mrb[0].mxu0
    %v2460 = vadd.f32 %v2226, %v2459
    %v2461 = vpop.f32.mrb[0].mxu0
    %v2462 = vadd.f32 %v2228, %v2461
    %2463 = vmatprep.mubr.bf16.mxu0 0
    %2464 = vmatmul.mubr.bf16.gmra.mrb[0].mxu0 %v2380
    %v2465 = vpop.f32.mrb[0].mxu0
    %v2466 = vadd.f32 %v2232, %v2465
    %v2467 = vpop.f32.mrb[0].mxu0
    %v2468 = vadd.f32 %v2234, %v2467
    %v2469 = vpop.f32.mrb[0].mxu0
    %v2470 = vadd.f32 %v2236, %v2469
    %v2471 = vpop.f32.mrb[0].mxu0
    %v2472 = vadd.f32 %v2238, %v2471
    %2473 = vmatprep.mubr.bf16.mxu0 0
    %2474 = vmatmul.mubr.bf16.gmra.mrb[0].mxu0 %v2383
    %v2475 = vpop.f32.mrb[0].mxu0
    %v2476 = vadd.f32 %v2242, %v2475
    %v2477 = vpop.f32.mrb[0].mxu0
    %v2478 = vadd.f32 %v2244, %v2477
    %v2479 = vpop.f32.mrb[0].mxu0
    %v2480 = vadd.f32 %v2246, %v2479
    %v2481 = vpop.f32.mrb[0].mxu0
    %v2482 = vadd.f32 %v2248, %v2481
    %2483 = vmatprep.mubr.bf16.mxu0 0
    %2484 = vmatmul.mubr.bf16.gmra.mrb[0].mxu0 %v2386
    %v2485 = vpop.f32.mrb[0].mxu0
    %v2486 = vadd.f32 %v2252, %v2485
    %v2487 = vpop.f32.mrb[0].mxu0
    %v2488 = vadd.f32 %v2254, %v2487
    %v2489 = vpop.f32.mrb[0].mxu0
    %v2490 = vadd.f32 %v2256, %v2489
    %v2491 = vpop.f32.mrb[0].mxu0
    %v2492 = vadd.f32 %v2258, %v2491
    %2493 = vmatprep.mubr.bf16.mxu0 0
    %2494 = vmatmul.mubr.bf16.gmra.mrb[0].mxu0 %v2389
    %v2495 = vpop.f32.mrb[0].mxu0
    %v2496 = vadd.f32 %v2262, %v2495
    %v2497 = vpop.f32.mrb[0].mxu0
    %v2498 = vadd.f32 %v2264, %v2497
    %v2499 = vpop.f32.mrb[0].mxu0
    %v2500 = vadd.f32 %v2266, %v2499
    %v2501 = vpop.f32.mrb[0].mxu0
    %v2502 = vadd.f32 %v2268, %v2501
    %2503 = vdwg.mxu0
    %2504 = vmatprep.subr.bf16.mxu0 0
    %2505 = vmatpush1.bf16.msra.mxu0 %v963
    %2506 = vmatprep.subr.bf16.mxu0 0
    %2507 = vmatpush1.bf16.msra.mxu0 0
    %2508 = vmatprep.subr.bf16.mxu0 0
    %2509 = vmatpush1.bf16.msra.mxu0 0
    %2510 = vmatprep.subr.bf16.mxu0 0
    %2511 = vmatpush1.bf16.msra.mxu0 0
    %2512 = vmatprep.subr.bf16.mxu0 0
    %2513 = vmatpush1.bf16.msra.mxu0 0
    %2514 = vmatprep.subr.bf16.mxu0 0
    %2515 = vmatpush1.bf16.msra.mxu0 0
    %2516 = vmatprep.subr.bf16.mxu0 0
    %2517 = vmatpush1.bf16.msra.mxu0 0
    %2518 = vmatprep.subr.bf16.mxu0 0
    %2519 = vmatpush1.bf16.msra.mxu0 0
    %2520 = vmatprep.subr.bf16.mxu0 0
    %2521 = vmatpush1.bf16.msra.mxu0 0
    %2522 = vmatprep.subr.bf16.mxu0 0
    %2523 = vmatpush1.bf16.msra.mxu0 0
    %2524 = vmatprep.subr.bf16.mxu0 0
    %2525 = vmatpush1.bf16.msra.mxu0 0
    %2526 = vmatprep.subr.bf16.mxu0 0
    %2527 = vmatpush1.bf16.msra.mxu0 0
    %2528 = vmatprep.subr.bf16.mxu0 0
    %2529 = vmatpush1.bf16.msra.mxu0 0
    %2530 = vmatprep.subr.bf16.mxu0 0
    %2531 = vmatpush1.bf16.msra.mxu0 0
    %2532 = vmatprep.subr.bf16.mxu0 0
    %2533 = vmatpush1.bf16.msra.mxu0 0
    %2534 = vmatprep.subr.bf16.mxu0 0
    %2535 = vmatpush1.bf16.msra.mxu0 0
    %2536 = vmatprep.mubr.bf16.mxu0 0
    %2537 = vmatmul.mubr.bf16.gmra.mrb[0].mxu0 %v2368
    %v2538 = vpop.f32.mrb[0].mxu0
    %v2539 = vadd.f32 %v2305, %v2538
    %v2540 = vpop.f32.mrb[0].mxu0
    %v2541 = vpop.f32.mrb[0].mxu0
    %v2542 = vadd.f32 %v2308, %v2541
    %v2543 = vpop.f32.mrb[0].mxu0
    %2544 = vmatprep.mubr.bf16.mxu0 0
    %2545 = vmatmul.mubr.bf16.gmra.mrb[0].mxu0 %v2371
    %v2546 = vpop.f32.mrb[0].mxu0
    %v2547 = vadd.f32 %v2313, %v2546
    %v2548 = vpop.f32.mrb[0].mxu0
    %v2549 = vpop.f32.mrb[0].mxu0
    %v2550 = vadd.f32 %v2316, %v2549
    %v2551 = vpop.f32.mrb[0].mxu0
    %2552 = vmatprep.mubr.bf16.mxu0 0
    %2553 = vmatmul.mubr.bf16.gmra.mrb[0].mxu0 %v2374
    %v2554 = vpop.f32.mrb[0].mxu0
    %v2555 = vadd.f32 %v2321, %v2554
    %v2556 = vpop.f32.mrb[0].mxu0
    %v2557 = vpop.f32.mrb[0].mxu0
    %v2558 = vadd.f32 %v2324, %v2557
    %v2559 = vpop.f32.mrb[0].mxu0
    %2560 = vmatprep.mubr.bf16.mxu0 0
    %2561 = vmatmul.mubr.bf16.gmra.mrb[0].mxu0 %v2377
    %v2562 = vpop.f32.mrb[0].mxu0
    %v2563 = vadd.f32 %v2329, %v2562
    %v2564 = vpop.f32.mrb[0].mxu0
    %v2565 = vpop.f32.mrb[0].mxu0
    %v2566 = vadd.f32 %v2332, %v2565
    %v2567 = vpop.f32.mrb[0].mxu0
    %2568 = vmatprep.mubr.bf16.mxu0 0
    %2569 = vmatmul.mubr.bf16.gmra.mrb[0].mxu0 %v2380
    %v2570 = vpop.f32.mrb[0].mxu0
    %v2571 = vadd.f32 %v2337, %v2570
    %v2572 = vpop.f32.mrb[0].mxu0
    %v2573 = vpop.f32.mrb[0].mxu0
    %v2574 = vadd.f32 %v2340, %v2573
    %v2575 = vpop.f32.mrb[0].mxu0
    %2576 = vmatprep.mubr.bf16.mxu0 0
    %2577 = vmatmul.mubr.bf16.gmra.mrb[0].mxu0 %v2383
    %v2578 = vpop.f32.mrb[0].mxu0
    %v2579 = vadd.f32 %v2345, %v2578
    %v2580 = vpop.f32.mrb[0].mxu0
    %v2581 = vpop.f32.mrb[0].mxu0
    %v2582 = vadd.f32 %v2348, %v2581
    %v2583 = vpop.f32.mrb[0].mxu0
    %2584 = vmatprep.mubr.bf16.mxu0 0
    %2585 = vmatmul.mubr.bf16.gmra.mrb[0].mxu0 %v2386
    %v2586 = vpop.f32.mrb[0].mxu0
    %v2587 = vadd.f32 %v2353, %v2586
    %v2588 = vpop.f32.mrb[0].mxu0
    %v2589 = vpop.f32.mrb[0].mxu0
    %v2590 = vadd.f32 %v2356, %v2589
    %v2591 = vpop.f32.mrb[0].mxu0
    %2592 = vmatprep.mubr.bf16.mxu0 0
    %2593 = vmatmul.mubr.bf16.gmra.mrb[0].mxu0 %v2389
    %v2594 = vpop.f32.mrb[0].mxu0
    %v2595 = vadd.f32 %v2361, %v2594
    %v2596 = vpop.f32.mrb[0].mxu0
    %v2597 = vpop.f32.mrb[0].mxu0
    %v2598 = vadd.f32 %v2364, %v2597
    %v2599 = vpop.f32.mrb[0].mxu0
    %2600 = vdwg.mxu0
    %v2601 = vmul.f32 %v1409, %v2426
    %v2602 = vmul.f32 %v1410, %v2428
    %v2603 = vmul.f32 %v1411, %v2539
    %v2604 = vmul.f32 %v1412, %v2430
    %v2605 = vmul.f32 %v1413, %v2432
    %v2606 = vmul.f32 %v1414, %v2542
    %v2607 = vmul.f32 %v1415, %v2436
    %v2608 = vmul.f32 %v1416, %v2438
    %v2609 = vmul.f32 %v1417, %v2547
    %v2610 = vmul.f32 %v1418, %v2440
    %v2611 = vmul.f32 %v1419, %v2442
    %v2612 = vmul.f32 %v1420, %v2550
    %v2613 = vmul.f32 %v1421, %v2446
    %v2614 = vmul.f32 %v1422, %v2448
    %v2615 = vmul.f32 %v1423, %v2555
    %v2616 = vmul.f32 %v1424, %v2450
    %v2617 = vmul.f32 %v1425, %v2452
    %v2618 = vmul.f32 %v1426, %v2558
    %v2619 = vmul.f32 %v1427, %v2456
    %v2620 = vmul.f32 %v1428, %v2458
    %v2621 = vmul.f32 %v1429, %v2563
    %v2622 = vmul.f32 %v1430, %v2460
    %v2623 = vmul.f32 %v1431, %v2462
    %v2624 = vmul.f32 %v1432, %v2566
    %v2625 = vmul.f32 %v1433, %v2466
    %v2626 = vmul.f32 %v1434, %v2468
    %v2627 = vmul.f32 %v1435, %v2571
    %v2628 = vmul.f32 %v1436, %v2470
    %v2629 = vmul.f32 %v1437, %v2472
    %v2630 = vmul.f32 %v1438, %v2574
    %v2631 = vmul.f32 %v1439, %v2476
    %v2632 = vmul.f32 %v1440, %v2478
    %v2633 = vmul.f32 %v1441, %v2579
    %v2634 = vmul.f32 %v1442, %v2480
    %v2635 = vmul.f32 %v1443, %v2482
    %v2636 = vmul.f32 %v1444, %v2582
    %v2637 = vmul.f32 %v1445, %v2486
    %v2638 = vmul.f32 %v1446, %v2488
    %v2639 = vmul.f32 %v1447, %v2587
    %v2640 = vmul.f32 %v1448, %v2490
    %v2641 = vmul.f32 %v1449, %v2492
    %v2642 = vmul.f32 %v1450, %v2590
    %v2643 = vmul.f32 %v1451, %v2496
    %v2644 = vmul.f32 %v1452, %v2498
    %v2645 = vmul.f32 %v1453, %v2595
    %v2646 = vmul.f32 %v1454, %v2500
    %v2647 = vmul.f32 %v1455, %v2502
    %v2648 = vmul.f32 %v1456, %v2598
    %v2649 = vld [vmem:[#allocation5] sm:$0x7]
    %v2651 = vlaneseq
    %v2652 = vshrl.u32 %v2651, 7
    %v2653 = vsub.s32 0, %v2652
    %v2654 = vrot.slane %v2649, %v2653
    %v2655 = vlaneseq
    %v2656 = vshrl.u32 %v2655, 7
    %v2657 = vsub.s32 1, %v2656
    %v2658 = vrot.slane %v2649, %v2657
    %v2659 = vlaneseq
    %v2660 = vshrl.u32 %v2659, 7
    %v2661 = vsub.s32 2, %v2660
    %v2662 = vrot.slane %v2649, %v2661
    %v2666 = vmul.f32 %v2601, %v2654
    %v2667 = vmul.f32 %v2602, %v2658
    %v2668 = vmul.f32 %v2603, %v2662
    %v2669 = vmul.f32 %v2604, %v2654
    %v2670 = vmul.f32 %v2605, %v2658
    %v2671 = vmul.f32 %v2606, %v2662
    %v2672 = vmul.f32 %v2607, %v2654
    %v2673 = vmul.f32 %v2608, %v2658
    %v2674 = vmul.f32 %v2609, %v2662
    %v2675 = vmul.f32 %v2610, %v2654
    %v2676 = vmul.f32 %v2611, %v2658
    %v2677 = vmul.f32 %v2612, %v2662
    %v2678 = vmul.f32 %v2613, %v2654
    %v2679 = vmul.f32 %v2614, %v2658
    %v2680 = vmul.f32 %v2615, %v2662
    %v2681 = vmul.f32 %v2616, %v2654
    %v2682 = vmul.f32 %v2617, %v2658
    %v2683 = vmul.f32 %v2618, %v2662
    %v2684 = vmul.f32 %v2619, %v2654
    %v2685 = vmul.f32 %v2620, %v2658
    %v2686 = vmul.f32 %v2621, %v2662
    %v2687 = vmul.f32 %v2622, %v2654
    %v2688 = vmul.f32 %v2623, %v2658
    %v2689 = vmul.f32 %v2624, %v2662
    %v2690 = vmul.f32 %v2625, %v2654
    %v2691 = vmul.f32 %v2626, %v2658
    %v2692 = vmul.f32 %v2627, %v2662
    %v2693 = vmul.f32 %v2628, %v2654
    %v2694 = vmul.f32 %v2629, %v2658
    %v2695 = vmul.f32 %v2630, %v2662
    %v2696 = vmul.f32 %v2631, %v2654
    %v2697 = vmul.f32 %v2632, %v2658
    %v2698 = vmul.f32 %v2633, %v2662
    %v2699 = vmul.f32 %v2634, %v2654
    %v2700 = vmul.f32 %v2635, %v2658
    %v2701 = vmul.f32 %v2636, %v2662
    %v2702 = vmul.f32 %v2637, %v2654
    %v2703 = vmul.f32 %v2638, %v2658
    %v2704 = vmul.f32 %v2639, %v2662
    %v2705 = vmul.f32 %v2640, %v2654
    %v2706 = vmul.f32 %v2641, %v2658
    %v2707 = vmul.f32 %v2642, %v2662
    %v2708 = vmul.f32 %v2643, %v2654
    %v2709 = vmul.f32 %v2644, %v2658
    %v2710 = vmul.f32 %v2645, %v2662
    %v2711 = vmul.f32 %v2646, %v2654
    %v2712 = vmul.f32 %v2647, %v2658
    %v2713 = vmul.f32 %v2648, %v2662
    %v2714 = vld [vmem:[#allocation7] sm:$0x7]
    %v2716 = vlaneseq
    %v2717 = vshrl.u32 %v2716, 7
    %v2718 = vsub.s32 0, %v2717
    %v2719 = vrot.slane %v2714, %v2718
    %v2720 = vlaneseq
    %v2721 = vshrl.u32 %v2720, 7
    %v2722 = vsub.s32 1, %v2721
    %v2723 = vrot.slane %v2714, %v2722
    %v2724 = vlaneseq
    %v2725 = vshrl.u32 %v2724, 7
    %v2726 = vsub.s32 2, %v2725
    %v2727 = vrot.slane %v2714, %v2726
    %v2731 = vadd.f32 %v2666, %v2719
    %v2732 = vadd.f32 %v2667, %v2723
    %v2733 = vadd.f32 %v2668, %v2727
    %v2734 = vadd.f32 %v2669, %v2719
    %v2735 = vadd.f32 %v2670, %v2723
    %v2736 = vadd.f32 %v2671, %v2727
    %v2737 = vadd.f32 %v2672, %v2719
    %v2738 = vadd.f32 %v2673, %v2723
    %v2739 = vadd.f32 %v2674, %v2727
    %v2740 = vadd.f32 %v2675, %v2719
    %v2741 = vadd.f32 %v2676, %v2723
    %v2742 = vadd.f32 %v2677, %v2727
    %v2743 = vadd.f32 %v2678, %v2719
    %v2744 = vadd.f32 %v2679, %v2723
    %v2745 = vadd.f32 %v2680, %v2727
    %v2746 = vadd.f32 %v2681, %v2719
    %v2747 = vadd.f32 %v2682, %v2723
    %v2748 = vadd.f32 %v2683, %v2727
    %v2749 = vadd.f32 %v2684, %v2719
    %v2750 = vadd.f32 %v2685, %v2723
    %v2751 = vadd.f32 %v2686, %v2727
    %v2752 = vadd.f32 %v2687, %v2719
    %v2753 = vadd.f32 %v2688, %v2723
    %v2754 = vadd.f32 %v2689, %v2727
    %v2755 = vadd.f32 %v2690, %v2719
    %v2756 = vadd.f32 %v2691, %v2723
    %v2757 = vadd.f32 %v2692, %v2727
    %v2758 = vadd.f32 %v2693, %v2719
    %v2759 = vadd.f32 %v2694, %v2723
    %v2760 = vadd.f32 %v2695, %v2727
    %v2761 = vadd.f32 %v2696, %v2719
    %v2762 = vadd.f32 %v2697, %v2723
    %v2763 = vadd.f32 %v2698, %v2727
    %v2764 = vadd.f32 %v2699, %v2719
    %v2765 = vadd.f32 %v2700, %v2723
    %v2766 = vadd.f32 %v2701, %v2727
    %v2767 = vadd.f32 %v2702, %v2719
    %v2768 = vadd.f32 %v2703, %v2723
    %v2769 = vadd.f32 %v2704, %v2727
    %v2770 = vadd.f32 %v2705, %v2719
    %v2771 = vadd.f32 %v2706, %v2723
    %v2772 = vadd.f32 %v2707, %v2727
    %v2773 = vadd.f32 %v2708, %v2719
    %v2774 = vadd.f32 %v2709, %v2723
    %v2775 = vadd.f32 %v2710, %v2727
    %v2776 = vadd.f32 %v2711, %v2719
    %v2777 = vadd.f32 %v2712, %v2723
    %v2778 = vadd.f32 %v2713, %v2727
    %2779 = vst [vmem:[#allocation11] sm:$0xff] %v2731
    %2780 = vst [vmem:[#allocation11 + $0x8] sm:$0xff] %v2732
    %2781 = vst [vmem:[#allocation11 + $0x10] sm:$0xff] %v2733
    %2782 = vst [vmem:[#allocation11 + $0x18] sm:$0xff] %v2734
    %2783 = vst [vmem:[#allocation11 + $0x20] sm:$0xff] %v2735
    %2784 = vst [vmem:[#allocation11 + $0x28] sm:$0xff] %v2736
    %2785 = vst [vmem:[#allocation11 + $0x30] sm:$0xff] %v2737
    %2786 = vst [vmem:[#allocation11 + $0x38] sm:$0xff] %v2738
    %2787 = vst [vmem:[#allocation11 + $0x40] sm:$0xff] %v2739
    %2788 = vst [vmem:[#allocation11 + $0x48] sm:$0xff] %v2740
    %2789 = vst [vmem:[#allocation11 + $0x50] sm:$0xff] %v2741
    %2790 = vst [vmem:[#allocation11 + $0x58] sm:$0xff] %v2742
    %2791 = vst [vmem:[#allocation11 + $0x60] sm:$0xff] %v2743
    %2792 = vst [vmem:[#allocation11 + $0x68] sm:$0xff] %v2744
    %2793 = vst [vmem:[#allocation11 + $0x70] sm:$0xff] %v2745
    %2794 = vst [vmem:[#allocation11 + $0x78] sm:$0xff] %v2746
    %2795 = vst [vmem:[#allocation11 + $0x80] sm:$0xff] %v2747
    %2796 = vst [vmem:[#allocation11 + $0x88] sm:$0xff] %v2748
    %2797 = vst [vmem:[#allocation11 + $0x90] sm:$0xff] %v2749
    %2798 = vst [vmem:[#allocation11 + $0x98] sm:$0xff] %v2750
    %2799 = vst [vmem:[#allocation11 + $0xa0] sm:$0xff] %v2751
    %2800 = vst [vmem:[#allocation11 + $0xa8] sm:$0xff] %v2752
    %2801 = vst [vmem:[#allocation11 + $0xb0] sm:$0xff] %v2753
    %2802 = vst [vmem:[#allocation11 + $0xb8] sm:$0xff] %v2754
    %2803 = vst [vmem:[#allocation11 + $0xc0] sm:$0xff] %v2755
    %2804 = vst [vmem:[#allocation11 + $0xc8] sm:$0xff] %v2756
    %2805 = vst [vmem:[#allocation11 + $0xd0] sm:$0xff] %v2757
    %2806 = vst [vmem:[#allocation11 + $0xd8] sm:$0xff] %v2758
    %2807 = vst [vmem:[#allocation11 + $0xe0] sm:$0xff] %v2759
    %2808 = vst [vmem:[#allocation11 + $0xe8] sm:$0xff] %v2760
    %2809 = vst [vmem:[#allocation11 + $0xf0] sm:$0xff] %v2761
    %2810 = vst [vmem:[#allocation11 + $0xf8] sm:$0xff] %v2762
    %2811 = vst [vmem:[#allocation11 + $0x100] sm:$0xff] %v2763
    %2812 = vst [vmem:[#allocation11 + $0x108] sm:$0xff] %v2764
    %2813 = vst [vmem:[#allocation11 + $0x110] sm:$0xff] %v2765
    %2814 = vst [vmem:[#allocation11 + $0x118] sm:$0xff] %v2766
    %2815 = vst [vmem:[#allocation11 + $0x120] sm:$0xff] %v2767
    %2816 = vst [vmem:[#allocation11 + $0x128] sm:$0xff] %v2768
    %2817 = vst [vmem:[#allocation11 + $0x130] sm:$0xff] %v2769
    %2818 = vst [vmem:[#allocation11 + $0x138] sm:$0xff] %v2770
    %2819 = vst [vmem:[#allocation11 + $0x140] sm:$0xff] %v2771
    %2820 = vst [vmem:[#allocation11 + $0x148] sm:$0xff] %v2772
    %2821 = vst [vmem:[#allocation11 + $0x150] sm:$0xff] %v2773
    %2822 = vst [vmem:[#allocation11 + $0x158] sm:$0xff] %v2774
    %2823 = vst [vmem:[#allocation11 + $0x160] sm:$0xff] %v2775
    %2824 = vst [vmem:[#allocation11 + $0x168] sm:$0xff] %v2776
    %2825 = vst [vmem:[#allocation11 + $0x170] sm:$0xff] %v2777
    %2826 = vst [vmem:[#allocation11 + $0x178] sm:$0xff] %v2778
    // Predicated region
    $region42: #{tpu_custom_call.1} parent=1 // pred_check
      _
    $region43: #{tpu_custom_call.1} parent=1 // pred_check_branch
      %2828 = sbr.rel (0) target = $region45
    $region44: #{tpu_custom_call.1} parent=1 // pred_region
      %s2830 = ssub.s32 6144, 6144
      %2831 = vsyncadd [#allocation4], %s2830
      %s2832 = sshll.u32 [#allocation11], 4
      %s2833 = int_to_ptr.vmem [resolvable:$true] %s2832
      %2838 = dma.vmem_to_hbm [thread:$0]  %s2833, 6144, %s5, [#allocation4], 384, 384, 24
    $region45: #{tpu_custom_call.1} parent=1 // pred_fallthru
      _
    // Predicated region
    $region46: #{tpu_custom_call.1} parent=1 // pred_check
      _
    $region47: #{tpu_custom_call.1} parent=1 // pred_check_branch
      %2840 = sbr.rel (0) target = $region49
    $region48: #{tpu_custom_call.1} parent=1 // pred_region
      %2841 = dma.done [#allocation4], 6144
    $region49: #{tpu_custom_call.1} parent=1 // pred_fallthru
      _
    %2842 = vsyncpa [#allocation3], 1
    %2843 = vsyncpa [#allocation6], 1
    %2844 = vsyncpa [#allocation9], 1
    %2845 = vsyncpa [#allocation4], 1

</llo_original>
